<compile_context>
chip_gen: v7x
topology: tpu7x:2x2x1
jax: 0.10.0
libtpu: 0.0.40
codegen_flags: <defaults>
</compile_context>

<pallas_src>
import functools

import jax
import jax.numpy as jnp
from jax.experimental import pallas as pl
from jax.experimental.pallas import tpu as pltpu


# ----------------------------------------------------------------------------
# Pallas kernel: fused bidirectional LSTM + masked mean pooling
# ----------------------------------------------------------------------------
def _bilstm_pool_kernel(x_ref, mask_ref, w_ih_ref, w_hh_ref, b_ref,
                        out_ref, gx_ref, *, hidden, out_lanes):
    H = hidden
    T, n, E = x_ref.shape
    G = 8 * H                       # fused gates [i_f i_b f_f f_b g_f g_b o_f o_b]
    D = 2 * H                       # fused state [h_fwd | h_bwd]

    # --- Hoisted input projection: one large MXU matmul for all timesteps ---
    x2 = x_ref[...].reshape(T * n, E)                                   # bf16
    gx = jnp.dot(x2, w_ih_ref[...], preferred_element_type=jnp.float32)
    gx_ref[...] = (gx + b_ref[...]).reshape(T, n, G)                    # f32 scratch

    # --- Loop-invariant lane masks (computed once, outside the recurrence) ---
    lane_g = jax.lax.broadcasted_iota(jnp.int32, (1, G), 1)
    fwd_cols = (lane_g % D) < H                       # fwd-direction gate columns
    g_cols = (lane_g >= 2 * D) & (lane_g < 3 * D)     # tanh ("g") gate columns
    lane_d = jax.lax.broadcasted_iota(jnp.int32, (1, D), 1)
    fwd_half = lane_d < H                             # fwd half of the fused state

    zeros = jnp.zeros((n, D), jnp.float32)

    def step(s, carry):
        h, c, acc = carry                             # (n, 2H) f32 each
        r = T - 1 - s                                 # backward-direction time index
        # fwd gates read x[s], bwd gates read x[r]; merge with a lane select.
        gates = jnp.where(fwd_cols, gx_ref[s], gx_ref[r])               # (n, 8H)
        gates = gates + jnp.dot(h.astype(jnp.bfloat16), w_hh_ref[...],
                                preferred_element_type=jnp.float32)
        # Activations over the full tile (EUP); select tanh lanes for gate g.
        act = jnp.where(g_cols, jnp.tanh(gates), jax.nn.sigmoid(gates))
        i = act[:, 0 * D:1 * D]
        f = act[:, 1 * D:2 * D]
        g = act[:, 2 * D:3 * D]
        o = act[:, 3 * D:4 * D]
        c = f * c + i * g
        h = o * jnp.tanh(c)
        # Masked sum-pool on the fly (fwd uses mask[s], bwd uses mask[r]).
        m = jnp.where(fwd_half, mask_ref[s], mask_ref[r])               # (n, 2H)
        acc = acc + m * h
        return h, c, acc

    unroll = True if T <= 16 else 4
    _, _, acc = jax.lax.fori_loop(0, T, step, (zeros, zeros, zeros),
                                  unroll=unroll)

    denom = jnp.sum(mask_ref[...], axis=0)                              # (n, 1)
    safe = jnp.where(denom > 0.0, denom, 1.0)
    # torch.mean over an empty set -> NaN, then masked_fill(nan, 0) == 0 here.
    pooled = jnp.where(denom > 0.0, acc / safe, 0.0)                    # (n, 2H)
    pad = out_lanes - D
    if pad > 0:   # lane-dense store; wrapper strips the zero pad
        pooled = jnp.concatenate(
            [pooled, jnp.zeros((n, pad), jnp.float32)], axis=-1)
    out_ref[...] = pooled


# ----------------------------------------------------------------------------
# Weight packing: PyTorch LSTM layout -> fused gate-major/direction-minor layout
# ----------------------------------------------------------------------------
def _pack_bilstm_weights(params, H):
    """Column layout of the fused gate dim (width 8H):
       [ i_f i_b | f_f f_b | g_f g_b | o_f o_b ], each sub-block H wide."""
    w_ih_f = params["w_ih_f"].T          # (E, 4H), gate blocks [i|f|g|o]
    w_ih_b = params["w_ih_b"].T
    w_hh_f = params["w_hh_f"].T          # (H, 4H)
    w_hh_b = params["w_hh_b"].T
    b_f = params["b_ih_f"] + params["b_hh_f"]     # (4H,)
    b_b = params["b_ih_b"] + params["b_hh_b"]

    def gate_major(a_f, a_b):
        rows = a_f.shape[0]
        return jnp.concatenate(
            [a_f.reshape(rows, 4, H), a_b.reshape(rows, 4, H)], axis=-1
        ).reshape(rows, 8 * H)

    w_ih_cat = gate_major(w_ih_f, w_ih_b)                               # (E, 8H)
    b_cat = jnp.concatenate(
        [b_f.reshape(4, H), b_b.reshape(4, H)], axis=-1).reshape(1, 8 * H)

    # Block-diagonal recurrent weights: rows [0:H] fwd hidden, [H:2H] bwd hidden.
    z = jnp.zeros((H, 4, H), w_hh_f.dtype)
    top = jnp.concatenate([w_hh_f.reshape(H, 4, H), z], axis=-1)
    bot = jnp.concatenate([z, w_hh_b.reshape(H, 4, H)], axis=-1)
    w_hh_cat = jnp.concatenate([top, bot], axis=0).reshape(2 * H, 8 * H)
    return w_ih_cat, w_hh_cat, b_cat


# ----------------------------------------------------------------------------
# Wrapper (mask construction, layout plumbing, pallas_call)
# ----------------------------------------------------------------------------
def fixed_sent_encoder_forward(last_hidden, input_ids, params, *, sep_token_id,
                               batch_size, num_cpnet, hidden_size, n_tile=8):
    # TODO(synk): tokenizer + frozen pretrained LM (steps 1-2 of forward) are
    # external and not translatable; `last_hidden` stands in for their output.
    N, T, E = last_hidden.shape
    H = hidden_size
    G = 8 * H
    out_lanes = ((2 * H + 127) // 128) * 128

    # special_token_mask, as in the PyTorch module.
    mask = (input_ids > sep_token_id).astype(jnp.float32)               # (N, T)

    # Time-major layouts so the kernel indexes the leading (time) axis of refs.
    x_tm = jnp.transpose(last_hidden, (1, 0, 2)).astype(jnp.bfloat16)   # (T, N, E)
    mask_tm = jnp.transpose(mask, (1, 0))[:, :, None]                   # (T, N, 1)

    # Pad N up to a multiple of the (sublane-aligned) tile.
    n_tile = max(8, (n_tile // 8) * 8)
    n_pad = ((N + n_tile - 1) // n_tile) * n_tile
    if n_pad != N:
        x_tm = jnp.pad(x_tm, ((0, 0), (0, n_pad - N), (0, 0)))
        mask_tm = jnp.pad(mask_tm, ((0, 0), (0, n_pad - N), (0, 0)))

    w_ih_cat, w_hh_cat, b_cat = _pack_bilstm_weights(params, H)
    w_ih_cat = w_ih_cat.astype(jnp.bfloat16)     # bf16 MXU operands
    w_hh_cat = w_hh_cat.astype(jnp.bfloat16)
    b_cat = b_cat.astype(jnp.float32)            # bias folded in f32, once

    grid = (n_pad // n_tile,)

    # VMEM budget: double-buffered tiles + resident weights + gates scratch.
    est = (2 * (T * n_tile * E * 2 + T * n_tile * 4 + n_tile * out_lanes * 4)
           + (E * G + 2 * H * G) * 2 + G * 4 + T * n_tile * G * 4)
    vmem_limit = int(min(max(2 * est, 16 << 20), 64 << 20))

    cost = pl.CostEstimate(
        flops=int(2 * n_pad * T * (E + 2 * H) * G + 12 * n_pad * T * 2 * H),
        transcendentals=int(3 * n_pad * T * G),
        bytes_accessed=int(x_tm.size * 2 + mask_tm.size * 4
                           + (w_ih_cat.size + w_hh_cat.size) * 2
                           + b_cat.size * 4 + n_pad * out_lanes * 4))

    kernel = functools.partial(_bilstm_pool_kernel, hidden=H, out_lanes=out_lanes)

    out = pl.pallas_call(
        kernel,
        out_shape=jax.ShapeDtypeStruct((n_pad, out_lanes), jnp.float32),
        grid=grid,
        in_specs=[
            pl.BlockSpec((T, n_tile, E), lambda i: (0, i, 0)),     # x (time-major)
            pl.BlockSpec((T, n_tile, 1), lambda i: (0, i, 0)),     # mask
            pl.BlockSpec((E, G), lambda i: (0, 0)),                # W_ih fused
            pl.BlockSpec((2 * H, G), lambda i: (0, 0)),            # W_hh block-diag
            pl.BlockSpec((1, G), lambda i: (0, 0)),                # bias
        ],
        out_specs=pl.BlockSpec((n_tile, out_lanes), lambda i: (i, 0)),
        scratch_shapes=[pltpu.VMEM((T, n_tile, G), jnp.float32)],   # hoisted gates
        compiler_params=pltpu.CompilerParams(
            dimension_semantics=("parallel",),
            vmem_limit_bytes=vmem_limit),
        cost_estimate=cost,
    )(x_tm, mask_tm, w_ih_cat, w_hh_cat, b_cat)

    sent = out[:N, :2 * H]
    # TODO(synk): nn.Dropout (on encoder_out and sent_embed) is identity at
    # inference; training-mode stochastic dropout is not implemented.
    return sent.reshape(batch_size, num_cpnet, 2 * H)


# ----------------------------------------------------------------------------
# Pure-JAX f32 reference (PyTorch semantics) for correctness checking
# ----------------------------------------------------------------------------
def _reference(last_hidden, input_ids, params, sep_token_id, H):
    mask = (input_ids > sep_token_id).astype(jnp.float32)
    N, T, E = last_hidden.shape

    def run_dir(w_ih, w_hh, b_ih, b_hh, reverse):
        xs = jnp.flip(last_hidden, axis=1) if reverse else last_hidden

        def scan_step(carry, x_t):
            h, c = carry
            gates = x_t @ w_ih.T + h @ w_hh.T + b_ih + b_hh
            i = jax.nn.sigmoid(gates[:, :H])
            f = jax.nn.sigmoid(gates[:, H:2 * H])
            g = jnp.tanh(gates[:, 2 * H:3 * H])
            o = jax.nn.sigmoid(gates[:, 3 * H:])
            c = f * c + i * g
            h = o * jnp.tanh(c)
            return (h, c), h

        init = (jnp.zeros((N, H)), jnp.zeros((N, H)))
        _, hs = jax.lax.scan(scan_step, init, jnp.swapaxes(xs, 0, 1))
        hs = jnp.swapaxes(hs, 0, 1)                                   # (N, T, H)
        return jnp.flip(hs, axis=1) if reverse else hs

    hs_f = run_dir(params["w_ih_f"], params["w_hh_f"], params["b_ih_f"], params["b_hh_f"], False)
    hs_b = run_dir(params["w_ih_b"], params["w_hh_b"], params["b_ih_b"], params["b_hh_b"], True)
    enc_out = jnp.concatenate([hs_f, hs_b], axis=-1)                  # (N, T, 2H)
    num = jnp.sum(enc_out * mask[:, :, None], axis=1)
    den = jnp.sum(mask, axis=1, keepdims=True)
    return jnp.where(den > 0, num / jnp.where(den > 0, den, 1.0), 0.0)


# ----------------------------------------------------------------------------
if __name__ == "__main__":
    batch_size, num_cpnet = 2, 4
    N = batch_size * num_cpnet          # sequences fed to the LSTM
    T = 8                               # padded seq length
    E = 32                              # embed_size (frozen LM hidden)
    H = 32                              # opt.hidden_size -> output dim 2H = 64
    SEP_TOKEN_ID = 102
    PAD_ID = 0

    key = jax.random.PRNGKey(0)
    k_x, k_ids, *k_w = jax.random.split(key, 10)

    # Synthetic stand-in for the frozen pretrained LM output.
    last_hidden = jax.random.normal(k_x, (N, T, E), dtype=jnp.float32)
    input_ids = jax.random.randint(k_ids, (N, T), 0, 200, dtype=jnp.int32)
    input_ids = input_ids.at[0].set(PAD_ID)   # all-special sequence -> NaN->0 path

    # PyTorch default LSTM init: U(-1/sqrt(H), 1/sqrt(H)).
    bound = 1.0 / (H ** 0.5)
    def u(k, shape):
        return jax.random.uniform(k, shape, jnp.float32, -bound, bound)
    params = {
        "w_ih_f": u(k_w[0], (4 * H, E)), "w_hh_f": u(k_w[1], (4 * H, H)),
        "b_ih_f": u(k_w[2], (4 * H,)),   "b_hh_f": u(k_w[3], (4 * H,)),
        "w_ih_b": u(k_w[4], (4 * H, E)), "w_hh_b": u(k_w[5], (4 * H, H)),
        "b_ih_b": u(k_w[6], (4 * H,)),   "b_hh_b": u(k_w[7], (4 * H,)),
    }

    sent_embed = fixed_sent_encoder_forward(
        last_hidden, input_ids, params, sep_token_id=SEP_TOKEN_ID,
        batch_size=batch_size, num_cpnet=num_cpnet, hidden_size=H)
    sent_embed = jax.block_until_ready(sent_embed)

    assert sent_embed.shape == (batch_size, num_cpnet, 2 * H)
    ref = _reference(last_hidden, input_ids, params, SEP_TOKEN_ID, H)
    # bf16 matmul operands in the kernel vs f32 reference -> loosened tolerance.
    assert jnp.allclose(sent_embed.reshape(N, 2 * H), ref, atol=3e-2, rtol=3e-2), \
        "Pallas kernel disagrees with reference"

    print("KERNEL_OK")
</pallas_src>

<mosaic_0001>
module attributes {stable_mosaic.version = 11 : i64} {
  func.func @_bilstm_pool_kernel(%arg0: i32, %arg1: memref<8x8x32xbf16, #tpu.memory_space<vmem>>, %arg2: memref<8x8x1xf32, #tpu.memory_space<vmem>>, %arg3: memref<32x256xbf16, #tpu.memory_space<vmem>>, %arg4: memref<64x256xbf16, #tpu.memory_space<vmem>>, %arg5: memref<1x256xf32, #tpu.memory_space<vmem>>, %arg6: memref<8x128xf32, #tpu.memory_space<vmem>>, %arg7: memref<8x8x256xf32, #tpu.memory_space<vmem>>) attributes {dimension_semantics = [#tpu.dimension_semantics<parallel>], iteration_bounds = array<i64: 1>, scalar_prefetch = 0 : i64, scratch_operands = 1 : i64, tpu.core_type = #tpu.core_type<tc>, window_params = [{transform_indices = @transform_0, window_bounds = array<i64: 8, 8, 32>}, {transform_indices = @transform_1, window_bounds = array<i64: 8, 8, 1>}, {pipeline_mode = #tpu.pipeline_mode<synchronous>, transform_indices = @transform_2, window_bounds = array<i64: 32, 256>}, {pipeline_mode = #tpu.pipeline_mode<synchronous>, transform_indices = @transform_3, window_bounds = array<i64: 64, 256>}, {pipeline_mode = #tpu.pipeline_mode<synchronous>, transform_indices = @transform_4, window_bounds = array<i64: 1, 256>}, {transform_indices = @transform_5, window_bounds = array<i64: 8, 128>}]} {
    %c0 = arith.constant 0 : index
    %c0_0 = arith.constant 0 : index
    %c0_1 = arith.constant 0 : index
    %0 = vector.load %arg1[%c0, %c0_0, %c0_1] : memref<8x8x32xbf16, #tpu.memory_space<vmem>>, vector<8x8x32xbf16>
    %1 = vector.shape_cast %0 : vector<8x8x32xbf16> to vector<64x32xbf16>
    %c0_2 = arith.constant 0 : index
    %c0_3 = arith.constant 0 : index
    %2 = vector.load %arg3[%c0_2, %c0_3] : memref<32x256xbf16, #tpu.memory_space<vmem>>, vector<32x256xbf16>
    %cst = arith.constant dense<0.000000e+00> : vector<64x256xf32>
    %3 = tpu.matmul %1, %2, %cst {dimension_numbers = #tpu.dot_dimension_numbers<[1], [0], [0], [1], [0, 0, 1, 1], [], []>} : vector<64x32xbf16>, vector<32x256xbf16>, vector<64x256xf32> -> vector<64x256xf32>
    %c0_4 = arith.constant 0 : index
    %c0_5 = arith.constant 0 : index
    %4 = vector.load %arg5[%c0_4, %c0_5] : memref<1x256xf32, #tpu.memory_space<vmem>>, vector<1x256xf32>
    %5 = vector.broadcast %4 : vector<1x256xf32> to vector<64x256xf32>
    %6 = arith.addf %3, %5 : vector<64x256xf32>
    %7 = vector.shape_cast %6 : vector<64x256xf32> to vector<8x8x256xf32>
    %c0_6 = arith.constant 0 : index
    %c0_7 = arith.constant 0 : index
    %c0_8 = arith.constant 0 : index
    %8 = vector.load %arg7[%c0_6, %c0_7, %c0_8] : memref<8x8x256xf32, #tpu.memory_space<vmem>>, vector<8x8x256xf32>
    tpu.vector_store %arg7[%c0_6, %c0_7, %c0_8], %7 {strides = array<i32>} : memref<8x8x256xf32, #tpu.memory_space<vmem>>, vector<8x8x256xf32>,
    %9 = tpu.iota {dimensions = array<i32: 1>} : vector<1x256xi32>
    %c64_i32 = arith.constant 64 : i32
    %c0_i32 = arith.constant 0 : i32
    %10 = arith.cmpi eq, %c64_i32, %c0_i32 : i32
    %c1_i32 = arith.constant 1 : i32
    %11 = arith.select %10, %c1_i32, %c64_i32 : i32
    %12 = vector.broadcast %11 : i32 to vector<1x256xi32>
    %13 = arith.remsi %9, %12 : vector<1x256xi32>
    %c0_i32_9 = arith.constant 0 : i32
    %14 = vector.broadcast %c0_i32_9 : i32 to vector<1x256xi32>
    %15 = arith.cmpi ne, %13, %14 : vector<1x256xi32>
    %c0_i32_10 = arith.constant 0 : i32
    %16 = vector.broadcast %c0_i32_10 : i32 to vector<1x256xi32>
    %17 = arith.cmpi slt, %13, %16 : vector<1x256xi32>
    %c0_i32_11 = arith.constant 0 : i32
    %18 = arith.cmpi slt, %11, %c0_i32_11 : i32
    %19 = vector.broadcast %18 : i1 to vector<1x256xi1>
    %20 = vector.broadcast %19 : vector<1x256xi1> to vector<1x256xi1>
    %21 = arith.xori %17, %20 : vector<1x256xi1>
    %22 = arith.andi %21, %15 : vector<1x256xi1>
    %23 = vector.broadcast %11 : i32 to vector<1x256xi32>
    %24 = arith.addi %13, %23 : vector<1x256xi32>
    %25 = arith.select %22, %24, %13 : vector<1x256xi1>, vector<1x256xi32>
    %c32_i32 = arith.constant 32 : i32
    %26 = vector.broadcast %c32_i32 : i32 to vector<1x256xi32>
    %27 = arith.cmpi slt, %25, %26 : vector<1x256xi32>
    %c128_i32 = arith.constant 128 : i32
    %28 = vector.broadcast %c128_i32 : i32 to vector<1x256xi32>
    %29 = arith.cmpi sge, %9, %28 : vector<1x256xi32>
    %c192_i32 = arith.constant 192 : i32
    %30 = vector.broadcast %c192_i32 : i32 to vector<1x256xi32>
    %31 = arith.cmpi slt, %9, %30 : vector<1x256xi32>
    %32 = arith.andi %29, %31 : vector<1x256xi1>
    %33 = tpu.iota {dimensions = array<i32: 1>} : vector<1x64xi32>
    %c32_i32_12 = arith.constant 32 : i32
    %34 = vector.broadcast %c32_i32_12 : i32 to vector<1x64xi32>
    %35 = arith.cmpi slt, %33, %34 : vector<1x64xi32>
    %cst_13 = arith.constant 0.000000e+00 : f32
    %36 = vector.broadcast %cst_13 : f32 to vector<8x64xf32>
    %c0_i32_14 = arith.constant 0 : i32
    %c7_i32 = arith.constant 7 : i32
    %37 = arith.subi %c7_i32, %c0_i32_14 : i32
    %38 = arith.index_cast %c0_i32_14 : i32 to index
    %c0_15 = arith.constant 0 : index
    %c0_16 = arith.constant 0 : index
    %39 = vector.load %arg7[%38, %c0_15, %c0_16] : memref<8x8x256xf32, #tpu.memory_space<vmem>>, vector<1x8x256xf32>
    %40 = vector.shape_cast %39 : vector<1x8x256xf32> to vector<8x256xf32>
    %41 = arith.index_cast %37 : i32 to index
    %c0_17 = arith.constant 0 : index
    %c0_18 = arith.constant 0 : index
    %42 = vector.load %arg7[%41, %c0_17, %c0_18] : memref<8x8x256xf32, #tpu.memory_space<vmem>>, vector<1x8x256xf32>
    %43 = vector.shape_cast %42 : vector<1x8x256xf32> to vector<8x256xf32>
    %44 = vector.shape_cast %27 : vector<1x256xi1> to vector<1x256xi1>
    %45 = vector.broadcast %44 : vector<1x256xi1> to vector<8x256xi1>
    %46 = arith.select %45, %40, %43 : vector<8x256xi1>, vector<8x256xf32>
    %47 = arith.truncf %36 : vector<8x64xf32> to vector<8x64xbf16>
    %c0_19 = arith.constant 0 : index
    %c0_20 = arith.constant 0 : index
    %48 = vector.load %arg4[%c0_19, %c0_20] : memref<64x256xbf16, #tpu.memory_space<vmem>>, vector<64x256xbf16>
    %cst_21 = arith.constant dense<0.000000e+00> : vector<8x256xf32>
    %49 = tpu.matmul %47, %48, %cst_21 {dimension_numbers = #tpu.dot_dimension_numbers<[1], [0], [0], [1], [0, 0, 1, 1], [], []>} : vector<8x64xbf16>, vector<64x256xbf16>, vector<8x256xf32> -> vector<8x256xf32>
    %50 = arith.addf %46, %49 : vector<8x256xf32>
    %51 = math.tanh %50 : vector<8x256xf32>
    %52 = arith.negf %50 : vector<8x256xf32>
    %53 = math.exp %52 : vector<8x256xf32>
    %cst_22 = arith.constant 1.000000e+00 : f32
    %54 = vector.broadcast %cst_22 : f32 to vector<8x256xf32>
    %55 = arith.addf %54, %53 : vector<8x256xf32>
    %56 = arith.divf %54, %55 : vector<8x256xf32>
    %57 = vector.shape_cast %32 : vector<1x256xi1> to vector<1x256xi1>
    %58 = vector.broadcast %57 : vector<1x256xi1> to vector<8x256xi1>
    %59 = arith.select %58, %51, %56 : vector<8x256xi1>, vector<8x256xf32>
    %60 = vector.extract_strided_slice %59 {offsets = [0, 0], sizes = [8, 64], strides = [1, 1]} : vector<8x256xf32> to vector<8x64xf32>
    %61 = vector.extract_strided_slice %59 {offsets = [0, 64], sizes = [8, 64], strides = [1, 1]} : vector<8x256xf32> to vector<8x64xf32>
    %62 = vector.extract_strided_slice %59 {offsets = [0, 128], sizes = [8, 64], strides = [1, 1]} : vector<8x256xf32> to vector<8x64xf32>
    %63 = vector.extract_strided_slice %59 {offsets = [0, 192], sizes = [8, 64], strides = [1, 1]} : vector<8x256xf32> to vector<8x64xf32>
    %64 = arith.mulf %61, %36 : vector<8x64xf32>
    %65 = arith.mulf %60, %62 : vector<8x64xf32>
    %66 = arith.addf %64, %65 : vector<8x64xf32>
    %67 = math.tanh %66 : vector<8x64xf32>
    %68 = arith.mulf %63, %67 : vector<8x64xf32>
    %69 = arith.index_cast %c0_i32_14 : i32 to index
    %c0_23 = arith.constant 0 : index
    %c0_24 = arith.constant 0 : index
    %70 = vector.load %arg2[%69, %c0_23, %c0_24] : memref<8x8x1xf32, #tpu.memory_space<vmem>>, vector<1x8x1xf32>
    %71 = vector.shape_cast %70 : vector<1x8x1xf32> to vector<8x1xf32>
    %72 = arith.index_cast %37 : i32 to index
    %c0_25 = arith.constant 0 : index
    %c0_26 = arith.constant 0 : index
    %73 = vector.load %arg2[%72, %c0_25, %c0_26] : memref<8x8x1xf32, #tpu.memory_space<vmem>>, vector<1x8x1xf32>
    %74 = vector.shape_cast %73 : vector<1x8x1xf32> to vector<8x1xf32>
    %75 = vector.shape_cast %35 : vector<1x64xi1> to vector<1x64xi1>
    %76 = vector.broadcast %75 : vector<1x64xi1> to vector<8x64xi1>
    %77 = vector.shape_cast %71 : vector<8x1xf32> to vector<8x1xf32>
    %78 = vector.broadcast %77 : vector<8x1xf32> to vector<8x64xf32>
    %79 = vector.shape_cast %74 : vector<8x1xf32> to vector<8x1xf32>
    %80 = vector.broadcast %79 : vector<8x1xf32> to vector<8x64xf32>
    %81 = arith.select %76, %78, %80 : vector<8x64xi1>, vector<8x64xf32>
    %82 = arith.mulf %81, %68 : vector<8x64xf32>
    %83 = arith.addf %36, %82 : vector<8x64xf32>
    %c1_i32_27 = arith.constant 1 : i32
    %c7_i32_28 = arith.constant 7 : i32
    %84 = arith.subi %c7_i32_28, %c1_i32_27 : i32
    %85 = arith.index_cast %c1_i32_27 : i32 to index
    %c0_29 = arith.constant 0 : index
    %c0_30 = arith.constant 0 : index
    %86 = vector.load %arg7[%85, %c0_29, %c0_30] : memref<8x8x256xf32, #tpu.memory_space<vmem>>, vector<1x8x256xf32>
    %87 = vector.shape_cast %86 : vector<1x8x256xf32> to vector<8x256xf32>
    %88 = arith.index_cast %84 : i32 to index
    %c0_31 = arith.constant 0 : index
    %c0_32 = arith.constant 0 : index
    %89 = vector.load %arg7[%88, %c0_31, %c0_32] : memref<8x8x256xf32, #tpu.memory_space<vmem>>, vector<1x8x256xf32>
    %90 = vector.shape_cast %89 : vector<1x8x256xf32> to vector<8x256xf32>
    %91 = vector.shape_cast %27 : vector<1x256xi1> to vector<1x256xi1>
    %92 = vector.broadcast %91 : vector<1x256xi1> to vector<8x256xi1>
    %93 = arith.select %92, %87, %90 : vector<8x256xi1>, vector<8x256xf32>
    %94 = arith.truncf %68 : vector<8x64xf32> to vector<8x64xbf16>
    %c0_33 = arith.constant 0 : index
    %c0_34 = arith.constant 0 : index
    %95 = vector.load %arg4[%c0_33, %c0_34] : memref<64x256xbf16, #tpu.memory_space<vmem>>, vector<64x256xbf16>
    %cst_35 = arith.constant dense<0.000000e+00> : vector<8x256xf32>
    %96 = tpu.matmul %94, %95, %cst_35 {dimension_numbers = #tpu.dot_dimension_numbers<[1], [0], [0], [1], [0, 0, 1, 1], [], []>} : vector<8x64xbf16>, vector<64x256xbf16>, vector<8x256xf32> -> vector<8x256xf32>
    %97 = arith.addf %93, %96 : vector<8x256xf32>
    %98 = math.tanh %97 : vector<8x256xf32>
    %99 = arith.negf %97 : vector<8x256xf32>
    %100 = math.exp %99 : vector<8x256xf32>
    %cst_36 = arith.constant 1.000000e+00 : f32
    %101 = vector.broadcast %cst_36 : f32 to vector<8x256xf32>
    %102 = arith.addf %101, %100 : vector<8x256xf32>
    %103 = arith.divf %101, %102 : vector<8x256xf32>
    %104 = vector.shape_cast %32 : vector<1x256xi1> to vector<1x256xi1>
    %105 = vector.broadcast %104 : vector<1x256xi1> to vector<8x256xi1>
    %106 = arith.select %105, %98, %103 : vector<8x256xi1>, vector<8x256xf32>
    %107 = vector.extract_strided_slice %106 {offsets = [0, 0], sizes = [8, 64], strides = [1, 1]} : vector<8x256xf32> to vector<8x64xf32>
    %108 = vector.extract_strided_slice %106 {offsets = [0, 64], sizes = [8, 64], strides = [1, 1]} : vector<8x256xf32> to vector<8x64xf32>
    %109 = vector.extract_strided_slice %106 {offsets = [0, 128], sizes = [8, 64], strides = [1, 1]} : vector<8x256xf32> to vector<8x64xf32>
    %110 = vector.extract_strided_slice %106 {offsets = [0, 192], sizes = [8, 64], strides = [1, 1]} : vector<8x256xf32> to vector<8x64xf32>
    %111 = arith.mulf %108, %66 : vector<8x64xf32>
    %112 = arith.mulf %107, %109 : vector<8x64xf32>
    %113 = arith.addf %111, %112 : vector<8x64xf32>
    %114 = math.tanh %113 : vector<8x64xf32>
    %115 = arith.mulf %110, %114 : vector<8x64xf32>
    %116 = arith.index_cast %c1_i32_27 : i32 to index
    %c0_37 = arith.constant 0 : index
    %c0_38 = arith.constant 0 : index
    %117 = vector.load %arg2[%116, %c0_37, %c0_38] : memref<8x8x1xf32, #tpu.memory_space<vmem>>, vector<1x8x1xf32>
    %118 = vector.shape_cast %117 : vector<1x8x1xf32> to vector<8x1xf32>
    %119 = arith.index_cast %84 : i32 to index
    %c0_39 = arith.constant 0 : index
    %c0_40 = arith.constant 0 : index
    %120 = vector.load %arg2[%119, %c0_39, %c0_40] : memref<8x8x1xf32, #tpu.memory_space<vmem>>, vector<1x8x1xf32>
    %121 = vector.shape_cast %120 : vector<1x8x1xf32> to vector<8x1xf32>
    %122 = vector.shape_cast %35 : vector<1x64xi1> to vector<1x64xi1>
    %123 = vector.broadcast %122 : vector<1x64xi1> to vector<8x64xi1>
    %124 = vector.shape_cast %118 : vector<8x1xf32> to vector<8x1xf32>
    %125 = vector.broadcast %124 : vector<8x1xf32> to vector<8x64xf32>
    %126 = vector.shape_cast %121 : vector<8x1xf32> to vector<8x1xf32>
    %127 = vector.broadcast %126 : vector<8x1xf32> to vector<8x64xf32>
    %128 = arith.select %123, %125, %127 : vector<8x64xi1>, vector<8x64xf32>
    %129 = arith.mulf %128, %115 : vector<8x64xf32>
    %130 = arith.addf %83, %129 : vector<8x64xf32>
    %c2_i32 = arith.constant 2 : i32
    %c7_i32_41 = arith.constant 7 : i32
    %131 = arith.subi %c7_i32_41, %c2_i32 : i32
    %132 = arith.index_cast %c2_i32 : i32 to index
    %c0_42 = arith.constant 0 : index
    %c0_43 = arith.constant 0 : index
    %133 = vector.load %arg7[%132, %c0_42, %c0_43] : memref<8x8x256xf32, #tpu.memory_space<vmem>>, vector<1x8x256xf32>
    %134 = vector.shape_cast %133 : vector<1x8x256xf32> to vector<8x256xf32>
    %135 = arith.index_cast %131 : i32 to index
    %c0_44 = arith.constant 0 : index
    %c0_45 = arith.constant 0 : index
    %136 = vector.load %arg7[%135, %c0_44, %c0_45] : memref<8x8x256xf32, #tpu.memory_space<vmem>>, vector<1x8x256xf32>
    %137 = vector.shape_cast %136 : vector<1x8x256xf32> to vector<8x256xf32>
    %138 = vector.shape_cast %27 : vector<1x256xi1> to vector<1x256xi1>
    %139 = vector.broadcast %138 : vector<1x256xi1> to vector<8x256xi1>
    %140 = arith.select %139, %134, %137 : vector<8x256xi1>, vector<8x256xf32>
    %141 = arith.truncf %115 : vector<8x64xf32> to vector<8x64xbf16>
    %c0_46 = arith.constant 0 : index
    %c0_47 = arith.constant 0 : index
    %142 = vector.load %arg4[%c0_46, %c0_47] : memref<64x256xbf16, #tpu.memory_space<vmem>>, vector<64x256xbf16>
    %cst_48 = arith.constant dense<0.000000e+00> : vector<8x256xf32>
    %143 = tpu.matmul %141, %142, %cst_48 {dimension_numbers = #tpu.dot_dimension_numbers<[1], [0], [0], [1], [0, 0, 1, 1], [], []>} : vector<8x64xbf16>, vector<64x256xbf16>, vector<8x256xf32> -> vector<8x256xf32>
    %144 = arith.addf %140, %143 : vector<8x256xf32>
    %145 = math.tanh %144 : vector<8x256xf32>
    %146 = arith.negf %144 : vector<8x256xf32>
    %147 = math.exp %146 : vector<8x256xf32>
    %cst_49 = arith.constant 1.000000e+00 : f32
    %148 = vector.broadcast %cst_49 : f32 to vector<8x256xf32>
    %149 = arith.addf %148, %147 : vector<8x256xf32>
    %150 = arith.divf %148, %149 : vector<8x256xf32>
    %151 = vector.shape_cast %32 : vector<1x256xi1> to vector<1x256xi1>
    %152 = vector.broadcast %151 : vector<1x256xi1> to vector<8x256xi1>
    %153 = arith.select %152, %145, %150 : vector<8x256xi1>, vector<8x256xf32>
    %154 = vector.extract_strided_slice %153 {offsets = [0, 0], sizes = [8, 64], strides = [1, 1]} : vector<8x256xf32> to vector<8x64xf32>
    %155 = vector.extract_strided_slice %153 {offsets = [0, 64], sizes = [8, 64], strides = [1, 1]} : vector<8x256xf32> to vector<8x64xf32>
    %156 = vector.extract_strided_slice %153 {offsets = [0, 128], sizes = [8, 64], strides = [1, 1]} : vector<8x256xf32> to vector<8x64xf32>
    %157 = vector.extract_strided_slice %153 {offsets = [0, 192], sizes = [8, 64], strides = [1, 1]} : vector<8x256xf32> to vector<8x64xf32>
    %158 = arith.mulf %155, %113 : vector<8x64xf32>
    %159 = arith.mulf %154, %156 : vector<8x64xf32>
    %160 = arith.addf %158, %159 : vector<8x64xf32>
    %161 = math.tanh %160 : vector<8x64xf32>
    %162 = arith.mulf %157, %161 : vector<8x64xf32>
    %163 = arith.index_cast %c2_i32 : i32 to index
    %c0_50 = arith.constant 0 : index
    %c0_51 = arith.constant 0 : index
    %164 = vector.load %arg2[%163, %c0_50, %c0_51] : memref<8x8x1xf32, #tpu.memory_space<vmem>>, vector<1x8x1xf32>
    %165 = vector.shape_cast %164 : vector<1x8x1xf32> to vector<8x1xf32>
    %166 = arith.index_cast %131 : i32 to index
    %c0_52 = arith.constant 0 : index
    %c0_53 = arith.constant 0 : index
    %167 = vector.load %arg2[%166, %c0_52, %c0_53] : memref<8x8x1xf32, #tpu.memory_space<vmem>>, vector<1x8x1xf32>
    %168 = vector.shape_cast %167 : vector<1x8x1xf32> to vector<8x1xf32>
    %169 = vector.shape_cast %35 : vector<1x64xi1> to vector<1x64xi1>
    %170 = vector.broadcast %169 : vector<1x64xi1> to vector<8x64xi1>
    %171 = vector.shape_cast %165 : vector<8x1xf32> to vector<8x1xf32>
    %172 = vector.broadcast %171 : vector<8x1xf32> to vector<8x64xf32>
    %173 = vector.shape_cast %168 : vector<8x1xf32> to vector<8x1xf32>
    %174 = vector.broadcast %173 : vector<8x1xf32> to vector<8x64xf32>
    %175 = arith.select %170, %172, %174 : vector<8x64xi1>, vector<8x64xf32>
    %176 = arith.mulf %175, %162 : vector<8x64xf32>
    %177 = arith.addf %130, %176 : vector<8x64xf32>
    %c3_i32 = arith.constant 3 : i32
    %c7_i32_54 = arith.constant 7 : i32
    %178 = arith.subi %c7_i32_54, %c3_i32 : i32
    %179 = arith.index_cast %c3_i32 : i32 to index
    %c0_55 = arith.constant 0 : index
    %c0_56 = arith.constant 0 : index
    %180 = vector.load %arg7[%179, %c0_55, %c0_56] : memref<8x8x256xf32, #tpu.memory_space<vmem>>, vector<1x8x256xf32>
    %181 = vector.shape_cast %180 : vector<1x8x256xf32> to vector<8x256xf32>
    %182 = arith.index_cast %178 : i32 to index
    %c0_57 = arith.constant 0 : index
    %c0_58 = arith.constant 0 : index
    %183 = vector.load %arg7[%182, %c0_57, %c0_58] : memref<8x8x256xf32, #tpu.memory_space<vmem>>, vector<1x8x256xf32>
    %184 = vector.shape_cast %183 : vector<1x8x256xf32> to vector<8x256xf32>
    %185 = vector.shape_cast %27 : vector<1x256xi1> to vector<1x256xi1>
    %186 = vector.broadcast %185 : vector<1x256xi1> to vector<8x256xi1>
    %187 = arith.select %186, %181, %184 : vector<8x256xi1>, vector<8x256xf32>
    %188 = arith.truncf %162 : vector<8x64xf32> to vector<8x64xbf16>
    %c0_59 = arith.constant 0 : index
    %c0_60 = arith.constant 0 : index
    %189 = vector.load %arg4[%c0_59, %c0_60] : memref<64x256xbf16, #tpu.memory_space<vmem>>, vector<64x256xbf16>
    %cst_61 = arith.constant dense<0.000000e+00> : vector<8x256xf32>
    %190 = tpu.matmul %188, %189, %cst_61 {dimension_numbers = #tpu.dot_dimension_numbers<[1], [0], [0], [1], [0, 0, 1, 1], [], []>} : vector<8x64xbf16>, vector<64x256xbf16>, vector<8x256xf32> -> vector<8x256xf32>
    %191 = arith.addf %187, %190 : vector<8x256xf32>
    %192 = math.tanh %191 : vector<8x256xf32>
    %193 = arith.negf %191 : vector<8x256xf32>
    %194 = math.exp %193 : vector<8x256xf32>
    %cst_62 = arith.constant 1.000000e+00 : f32
    %195 = vector.broadcast %cst_62 : f32 to vector<8x256xf32>
    %196 = arith.addf %195, %194 : vector<8x256xf32>
    %197 = arith.divf %195, %196 : vector<8x256xf32>
    %198 = vector.shape_cast %32 : vector<1x256xi1> to vector<1x256xi1>
    %199 = vector.broadcast %198 : vector<1x256xi1> to vector<8x256xi1>
    %200 = arith.select %199, %192, %197 : vector<8x256xi1>, vector<8x256xf32>
    %201 = vector.extract_strided_slice %200 {offsets = [0, 0], sizes = [8, 64], strides = [1, 1]} : vector<8x256xf32> to vector<8x64xf32>
    %202 = vector.extract_strided_slice %200 {offsets = [0, 64], sizes = [8, 64], strides = [1, 1]} : vector<8x256xf32> to vector<8x64xf32>
    %203 = vector.extract_strided_slice %200 {offsets = [0, 128], sizes = [8, 64], strides = [1, 1]} : vector<8x256xf32> to vector<8x64xf32>
    %204 = vector.extract_strided_slice %200 {offsets = [0, 192], sizes = [8, 64], strides = [1, 1]} : vector<8x256xf32> to vector<8x64xf32>
    %205 = arith.mulf %202, %160 : vector<8x64xf32>
    %206 = arith.mulf %201, %203 : vector<8x64xf32>
    %207 = arith.addf %205, %206 : vector<8x64xf32>
    %208 = math.tanh %207 : vector<8x64xf32>
    %209 = arith.mulf %204, %208 : vector<8x64xf32>
    %210 = arith.index_cast %c3_i32 : i32 to index
    %c0_63 = arith.constant 0 : index
    %c0_64 = arith.constant 0 : index
    %211 = vector.load %arg2[%210, %c0_63, %c0_64] : memref<8x8x1xf32, #tpu.memory_space<vmem>>, vector<1x8x1xf32>
    %212 = vector.shape_cast %211 : vector<1x8x1xf32> to vector<8x1xf32>
    %213 = arith.index_cast %178 : i32 to index
    %c0_65 = arith.constant 0 : index
    %c0_66 = arith.constant 0 : index
    %214 = vector.load %arg2[%213, %c0_65, %c0_66] : memref<8x8x1xf32, #tpu.memory_space<vmem>>, vector<1x8x1xf32>
    %215 = vector.shape_cast %214 : vector<1x8x1xf32> to vector<8x1xf32>
    %216 = vector.shape_cast %35 : vector<1x64xi1> to vector<1x64xi1>
    %217 = vector.broadcast %216 : vector<1x64xi1> to vector<8x64xi1>
    %218 = vector.shape_cast %212 : vector<8x1xf32> to vector<8x1xf32>
    %219 = vector.broadcast %218 : vector<8x1xf32> to vector<8x64xf32>
    %220 = vector.shape_cast %215 : vector<8x1xf32> to vector<8x1xf32>
    %221 = vector.broadcast %220 : vector<8x1xf32> to vector<8x64xf32>
    %222 = arith.select %217, %219, %221 : vector<8x64xi1>, vector<8x64xf32>
    %223 = arith.mulf %222, %209 : vector<8x64xf32>
    %224 = arith.addf %177, %223 : vector<8x64xf32>
    %c4_i32 = arith.constant 4 : i32
    %c7_i32_67 = arith.constant 7 : i32
    %225 = arith.subi %c7_i32_67, %c4_i32 : i32
    %226 = arith.index_cast %c4_i32 : i32 to index
    %c0_68 = arith.constant 0 : index
    %c0_69 = arith.constant 0 : index
    %227 = vector.load %arg7[%226, %c0_68, %c0_69] : memref<8x8x256xf32, #tpu.memory_space<vmem>>, vector<1x8x256xf32>
    %228 = vector.shape_cast %227 : vector<1x8x256xf32> to vector<8x256xf32>
    %229 = arith.index_cast %225 : i32 to index
    %c0_70 = arith.constant 0 : index
    %c0_71 = arith.constant 0 : index
    %230 = vector.load %arg7[%229, %c0_70, %c0_71] : memref<8x8x256xf32, #tpu.memory_space<vmem>>, vector<1x8x256xf32>
    %231 = vector.shape_cast %230 : vector<1x8x256xf32> to vector<8x256xf32>
    %232 = vector.shape_cast %27 : vector<1x256xi1> to vector<1x256xi1>
    %233 = vector.broadcast %232 : vector<1x256xi1> to vector<8x256xi1>
    %234 = arith.select %233, %228, %231 : vector<8x256xi1>, vector<8x256xf32>
    %235 = arith.truncf %209 : vector<8x64xf32> to vector<8x64xbf16>
    %c0_72 = arith.constant 0 : index
    %c0_73 = arith.constant 0 : index
    %236 = vector.load %arg4[%c0_72, %c0_73] : memref<64x256xbf16, #tpu.memory_space<vmem>>, vector<64x256xbf16>
    %cst_74 = arith.constant dense<0.000000e+00> : vector<8x256xf32>
    %237 = tpu.matmul %235, %236, %cst_74 {dimension_numbers = #tpu.dot_dimension_numbers<[1], [0], [0], [1], [0, 0, 1, 1], [], []>} : vector<8x64xbf16>, vector<64x256xbf16>, vector<8x256xf32> -> vector<8x256xf32>
    %238 = arith.addf %234, %237 : vector<8x256xf32>
    %239 = math.tanh %238 : vector<8x256xf32>
    %240 = arith.negf %238 : vector<8x256xf32>
    %241 = math.exp %240 : vector<8x256xf32>
    %cst_75 = arith.constant 1.000000e+00 : f32
    %242 = vector.broadcast %cst_75 : f32 to vector<8x256xf32>
    %243 = arith.addf %242, %241 : vector<8x256xf32>
    %244 = arith.divf %242, %243 : vector<8x256xf32>
    %245 = vector.shape_cast %32 : vector<1x256xi1> to vector<1x256xi1>
    %246 = vector.broadcast %245 : vector<1x256xi1> to vector<8x256xi1>
    %247 = arith.select %246, %239, %244 : vector<8x256xi1>, vector<8x256xf32>
    %248 = vector.extract_strided_slice %247 {offsets = [0, 0], sizes = [8, 64], strides = [1, 1]} : vector<8x256xf32> to vector<8x64xf32>
    %249 = vector.extract_strided_slice %247 {offsets = [0, 64], sizes = [8, 64], strides = [1, 1]} : vector<8x256xf32> to vector<8x64xf32>
    %250 = vector.extract_strided_slice %247 {offsets = [0, 128], sizes = [8, 64], strides = [1, 1]} : vector<8x256xf32> to vector<8x64xf32>
    %251 = vector.extract_strided_slice %247 {offsets = [0, 192], sizes = [8, 64], strides = [1, 1]} : vector<8x256xf32> to vector<8x64xf32>
    %252 = arith.mulf %249, %207 : vector<8x64xf32>
    %253 = arith.mulf %248, %250 : vector<8x64xf32>
    %254 = arith.addf %252, %253 : vector<8x64xf32>
    %255 = math.tanh %254 : vector<8x64xf32>
    %256 = arith.mulf %251, %255 : vector<8x64xf32>
    %257 = arith.index_cast %c4_i32 : i32 to index
    %c0_76 = arith.constant 0 : index
    %c0_77 = arith.constant 0 : index
    %258 = vector.load %arg2[%257, %c0_76, %c0_77] : memref<8x8x1xf32, #tpu.memory_space<vmem>>, vector<1x8x1xf32>
    %259 = vector.shape_cast %258 : vector<1x8x1xf32> to vector<8x1xf32>
    %260 = arith.index_cast %225 : i32 to index
    %c0_78 = arith.constant 0 : index
    %c0_79 = arith.constant 0 : index
    %261 = vector.load %arg2[%260, %c0_78, %c0_79] : memref<8x8x1xf32, #tpu.memory_space<vmem>>, vector<1x8x1xf32>
    %262 = vector.shape_cast %261 : vector<1x8x1xf32> to vector<8x1xf32>
    %263 = vector.shape_cast %35 : vector<1x64xi1> to vector<1x64xi1>
    %264 = vector.broadcast %263 : vector<1x64xi1> to vector<8x64xi1>
    %265 = vector.shape_cast %259 : vector<8x1xf32> to vector<8x1xf32>
    %266 = vector.broadcast %265 : vector<8x1xf32> to vector<8x64xf32>
    %267 = vector.shape_cast %262 : vector<8x1xf32> to vector<8x1xf32>
    %268 = vector.broadcast %267 : vector<8x1xf32> to vector<8x64xf32>
    %269 = arith.select %264, %266, %268 : vector<8x64xi1>, vector<8x64xf32>
    %270 = arith.mulf %269, %256 : vector<8x64xf32>
    %271 = arith.addf %224, %270 : vector<8x64xf32>
    %c5_i32 = arith.constant 5 : i32
    %c7_i32_80 = arith.constant 7 : i32
    %272 = arith.subi %c7_i32_80, %c5_i32 : i32
    %273 = arith.index_cast %c5_i32 : i32 to index
    %c0_81 = arith.constant 0 : index
    %c0_82 = arith.constant 0 : index
    %274 = vector.load %arg7[%273, %c0_81, %c0_82] : memref<8x8x256xf32, #tpu.memory_space<vmem>>, vector<1x8x256xf32>
    %275 = vector.shape_cast %274 : vector<1x8x256xf32> to vector<8x256xf32>
    %276 = arith.index_cast %272 : i32 to index
    %c0_83 = arith.constant 0 : index
    %c0_84 = arith.constant 0 : index
    %277 = vector.load %arg7[%276, %c0_83, %c0_84] : memref<8x8x256xf32, #tpu.memory_space<vmem>>, vector<1x8x256xf32>
    %278 = vector.shape_cast %277 : vector<1x8x256xf32> to vector<8x256xf32>
    %279 = vector.shape_cast %27 : vector<1x256xi1> to vector<1x256xi1>
    %280 = vector.broadcast %279 : vector<1x256xi1> to vector<8x256xi1>
    %281 = arith.select %280, %275, %278 : vector<8x256xi1>, vector<8x256xf32>
    %282 = arith.truncf %256 : vector<8x64xf32> to vector<8x64xbf16>
    %c0_85 = arith.constant 0 : index
    %c0_86 = arith.constant 0 : index
    %283 = vector.load %arg4[%c0_85, %c0_86] : memref<64x256xbf16, #tpu.memory_space<vmem>>, vector<64x256xbf16>
    %cst_87 = arith.constant dense<0.000000e+00> : vector<8x256xf32>
    %284 = tpu.matmul %282, %283, %cst_87 {dimension_numbers = #tpu.dot_dimension_numbers<[1], [0], [0], [1], [0, 0, 1, 1], [], []>} : vector<8x64xbf16>, vector<64x256xbf16>, vector<8x256xf32> -> vector<8x256xf32>
    %285 = arith.addf %281, %284 : vector<8x256xf32>
    %286 = math.tanh %285 : vector<8x256xf32>
    %287 = arith.negf %285 : vector<8x256xf32>
    %288 = math.exp %287 : vector<8x256xf32>
    %cst_88 = arith.constant 1.000000e+00 : f32
    %289 = vector.broadcast %cst_88 : f32 to vector<8x256xf32>
    %290 = arith.addf %289, %288 : vector<8x256xf32>
    %291 = arith.divf %289, %290 : vector<8x256xf32>
    %292 = vector.shape_cast %32 : vector<1x256xi1> to vector<1x256xi1>
    %293 = vector.broadcast %292 : vector<1x256xi1> to vector<8x256xi1>
    %294 = arith.select %293, %286, %291 : vector<8x256xi1>, vector<8x256xf32>
    %295 = vector.extract_strided_slice %294 {offsets = [0, 0], sizes = [8, 64], strides = [1, 1]} : vector<8x256xf32> to vector<8x64xf32>
    %296 = vector.extract_strided_slice %294 {offsets = [0, 64], sizes = [8, 64], strides = [1, 1]} : vector<8x256xf32> to vector<8x64xf32>
    %297 = vector.extract_strided_slice %294 {offsets = [0, 128], sizes = [8, 64], strides = [1, 1]} : vector<8x256xf32> to vector<8x64xf32>
    %298 = vector.extract_strided_slice %294 {offsets = [0, 192], sizes = [8, 64], strides = [1, 1]} : vector<8x256xf32> to vector<8x64xf32>
    %299 = arith.mulf %296, %254 : vector<8x64xf32>
    %300 = arith.mulf %295, %297 : vector<8x64xf32>
    %301 = arith.addf %299, %300 : vector<8x64xf32>
    %302 = math.tanh %301 : vector<8x64xf32>
    %303 = arith.mulf %298, %302 : vector<8x64xf32>
    %304 = arith.index_cast %c5_i32 : i32 to index
    %c0_89 = arith.constant 0 : index
    %c0_90 = arith.constant 0 : index
    %305 = vector.load %arg2[%304, %c0_89, %c0_90] : memref<8x8x1xf32, #tpu.memory_space<vmem>>, vector<1x8x1xf32>
    %306 = vector.shape_cast %305 : vector<1x8x1xf32> to vector<8x1xf32>
    %307 = arith.index_cast %272 : i32 to index
    %c0_91 = arith.constant 0 : index
    %c0_92 = arith.constant 0 : index
    %308 = vector.load %arg2[%307, %c0_91, %c0_92] : memref<8x8x1xf32, #tpu.memory_space<vmem>>, vector<1x8x1xf32>
    %309 = vector.shape_cast %308 : vector<1x8x1xf32> to vector<8x1xf32>
    %310 = vector.shape_cast %35 : vector<1x64xi1> to vector<1x64xi1>
    %311 = vector.broadcast %310 : vector<1x64xi1> to vector<8x64xi1>
    %312 = vector.shape_cast %306 : vector<8x1xf32> to vector<8x1xf32>
    %313 = vector.broadcast %312 : vector<8x1xf32> to vector<8x64xf32>
    %314 = vector.shape_cast %309 : vector<8x1xf32> to vector<8x1xf32>
    %315 = vector.broadcast %314 : vector<8x1xf32> to vector<8x64xf32>
    %316 = arith.select %311, %313, %315 : vector<8x64xi1>, vector<8x64xf32>
    %317 = arith.mulf %316, %303 : vector<8x64xf32>
    %318 = arith.addf %271, %317 : vector<8x64xf32>
    %c6_i32 = arith.constant 6 : i32
    %c7_i32_93 = arith.constant 7 : i32
    %319 = arith.subi %c7_i32_93, %c6_i32 : i32
    %320 = arith.index_cast %c6_i32 : i32 to index
    %c0_94 = arith.constant 0 : index
    %c0_95 = arith.constant 0 : index
    %321 = vector.load %arg7[%320, %c0_94, %c0_95] : memref<8x8x256xf32, #tpu.memory_space<vmem>>, vector<1x8x256xf32>
    %322 = vector.shape_cast %321 : vector<1x8x256xf32> to vector<8x256xf32>
    %323 = arith.index_cast %319 : i32 to index
    %c0_96 = arith.constant 0 : index
    %c0_97 = arith.constant 0 : index
    %324 = vector.load %arg7[%323, %c0_96, %c0_97] : memref<8x8x256xf32, #tpu.memory_space<vmem>>, vector<1x8x256xf32>
    %325 = vector.shape_cast %324 : vector<1x8x256xf32> to vector<8x256xf32>
    %326 = vector.shape_cast %27 : vector<1x256xi1> to vector<1x256xi1>
    %327 = vector.broadcast %326 : vector<1x256xi1> to vector<8x256xi1>
    %328 = arith.select %327, %322, %325 : vector<8x256xi1>, vector<8x256xf32>
    %329 = arith.truncf %303 : vector<8x64xf32> to vector<8x64xbf16>
    %c0_98 = arith.constant 0 : index
    %c0_99 = arith.constant 0 : index
    %330 = vector.load %arg4[%c0_98, %c0_99] : memref<64x256xbf16, #tpu.memory_space<vmem>>, vector<64x256xbf16>
    %cst_100 = arith.constant dense<0.000000e+00> : vector<8x256xf32>
    %331 = tpu.matmul %329, %330, %cst_100 {dimension_numbers = #tpu.dot_dimension_numbers<[1], [0], [0], [1], [0, 0, 1, 1], [], []>} : vector<8x64xbf16>, vector<64x256xbf16>, vector<8x256xf32> -> vector<8x256xf32>
    %332 = arith.addf %328, %331 : vector<8x256xf32>
    %333 = math.tanh %332 : vector<8x256xf32>
    %334 = arith.negf %332 : vector<8x256xf32>
    %335 = math.exp %334 : vector<8x256xf32>
    %cst_101 = arith.constant 1.000000e+00 : f32
    %336 = vector.broadcast %cst_101 : f32 to vector<8x256xf32>
    %337 = arith.addf %336, %335 : vector<8x256xf32>
    %338 = arith.divf %336, %337 : vector<8x256xf32>
    %339 = vector.shape_cast %32 : vector<1x256xi1> to vector<1x256xi1>
    %340 = vector.broadcast %339 : vector<1x256xi1> to vector<8x256xi1>
    %341 = arith.select %340, %333, %338 : vector<8x256xi1>, vector<8x256xf32>
    %342 = vector.extract_strided_slice %341 {offsets = [0, 0], sizes = [8, 64], strides = [1, 1]} : vector<8x256xf32> to vector<8x64xf32>
    %343 = vector.extract_strided_slice %341 {offsets = [0, 64], sizes = [8, 64], strides = [1, 1]} : vector<8x256xf32> to vector<8x64xf32>
    %344 = vector.extract_strided_slice %341 {offsets = [0, 128], sizes = [8, 64], strides = [1, 1]} : vector<8x256xf32> to vector<8x64xf32>
    %345 = vector.extract_strided_slice %341 {offsets = [0, 192], sizes = [8, 64], strides = [1, 1]} : vector<8x256xf32> to vector<8x64xf32>
    %346 = arith.mulf %343, %301 : vector<8x64xf32>
    %347 = arith.mulf %342, %344 : vector<8x64xf32>
    %348 = arith.addf %346, %347 : vector<8x64xf32>
    %349 = math.tanh %348 : vector<8x64xf32>
    %350 = arith.mulf %345, %349 : vector<8x64xf32>
    %351 = arith.index_cast %c6_i32 : i32 to index
    %c0_102 = arith.constant 0 : index
    %c0_103 = arith.constant 0 : index
    %352 = vector.load %arg2[%351, %c0_102, %c0_103] : memref<8x8x1xf32, #tpu.memory_space<vmem>>, vector<1x8x1xf32>
    %353 = vector.shape_cast %352 : vector<1x8x1xf32> to vector<8x1xf32>
    %354 = arith.index_cast %319 : i32 to index
    %c0_104 = arith.constant 0 : index
    %c0_105 = arith.constant 0 : index
    %355 = vector.load %arg2[%354, %c0_104, %c0_105] : memref<8x8x1xf32, #tpu.memory_space<vmem>>, vector<1x8x1xf32>
    %356 = vector.shape_cast %355 : vector<1x8x1xf32> to vector<8x1xf32>
    %357 = vector.shape_cast %35 : vector<1x64xi1> to vector<1x64xi1>
    %358 = vector.broadcast %357 : vector<1x64xi1> to vector<8x64xi1>
    %359 = vector.shape_cast %353 : vector<8x1xf32> to vector<8x1xf32>
    %360 = vector.broadcast %359 : vector<8x1xf32> to vector<8x64xf32>
    %361 = vector.shape_cast %356 : vector<8x1xf32> to vector<8x1xf32>
    %362 = vector.broadcast %361 : vector<8x1xf32> to vector<8x64xf32>
    %363 = arith.select %358, %360, %362 : vector<8x64xi1>, vector<8x64xf32>
    %364 = arith.mulf %363, %350 : vector<8x64xf32>
    %365 = arith.addf %318, %364 : vector<8x64xf32>
    %c7_i32_106 = arith.constant 7 : i32
    %c7_i32_107 = arith.constant 7 : i32
    %366 = arith.subi %c7_i32_107, %c7_i32_106 : i32
    %367 = arith.index_cast %c7_i32_106 : i32 to index
    %c0_108 = arith.constant 0 : index
    %c0_109 = arith.constant 0 : index
    %368 = vector.load %arg7[%367, %c0_108, %c0_109] : memref<8x8x256xf32, #tpu.memory_space<vmem>>, vector<1x8x256xf32>
    %369 = vector.shape_cast %368 : vector<1x8x256xf32> to vector<8x256xf32>
    %370 = arith.index_cast %366 : i32 to index
    %c0_110 = arith.constant 0 : index
    %c0_111 = arith.constant 0 : index
    %371 = vector.load %arg7[%370, %c0_110, %c0_111] : memref<8x8x256xf32, #tpu.memory_space<vmem>>, vector<1x8x256xf32>
    %372 = vector.shape_cast %371 : vector<1x8x256xf32> to vector<8x256xf32>
    %373 = vector.shape_cast %27 : vector<1x256xi1> to vector<1x256xi1>
    %374 = vector.broadcast %373 : vector<1x256xi1> to vector<8x256xi1>
    %375 = arith.select %374, %369, %372 : vector<8x256xi1>, vector<8x256xf32>
    %376 = arith.truncf %350 : vector<8x64xf32> to vector<8x64xbf16>
    %c0_112 = arith.constant 0 : index
    %c0_113 = arith.constant 0 : index
    %377 = vector.load %arg4[%c0_112, %c0_113] : memref<64x256xbf16, #tpu.memory_space<vmem>>, vector<64x256xbf16>
    %cst_114 = arith.constant dense<0.000000e+00> : vector<8x256xf32>
    %378 = tpu.matmul %376, %377, %cst_114 {dimension_numbers = #tpu.dot_dimension_numbers<[1], [0], [0], [1], [0, 0, 1, 1], [], []>} : vector<8x64xbf16>, vector<64x256xbf16>, vector<8x256xf32> -> vector<8x256xf32>
    %379 = arith.addf %375, %378 : vector<8x256xf32>
    %380 = math.tanh %379 : vector<8x256xf32>
    %381 = arith.negf %379 : vector<8x256xf32>
    %382 = math.exp %381 : vector<8x256xf32>
    %cst_115 = arith.constant 1.000000e+00 : f32
    %383 = vector.broadcast %cst_115 : f32 to vector<8x256xf32>
    %384 = arith.addf %383, %382 : vector<8x256xf32>
    %385 = arith.divf %383, %384 : vector<8x256xf32>
    %386 = vector.shape_cast %32 : vector<1x256xi1> to vector<1x256xi1>
    %387 = vector.broadcast %386 : vector<1x256xi1> to vector<8x256xi1>
    %388 = arith.select %387, %380, %385 : vector<8x256xi1>, vector<8x256xf32>
    %389 = vector.extract_strided_slice %388 {offsets = [0, 0], sizes = [8, 64], strides = [1, 1]} : vector<8x256xf32> to vector<8x64xf32>
    %390 = vector.extract_strided_slice %388 {offsets = [0, 64], sizes = [8, 64], strides = [1, 1]} : vector<8x256xf32> to vector<8x64xf32>
    %391 = vector.extract_strided_slice %388 {offsets = [0, 128], sizes = [8, 64], strides = [1, 1]} : vector<8x256xf32> to vector<8x64xf32>
    %392 = vector.extract_strided_slice %388 {offsets = [0, 192], sizes = [8, 64], strides = [1, 1]} : vector<8x256xf32> to vector<8x64xf32>
    %393 = arith.mulf %390, %348 : vector<8x64xf32>
    %394 = arith.mulf %389, %391 : vector<8x64xf32>
    %395 = arith.addf %393, %394 : vector<8x64xf32>
    %396 = math.tanh %395 : vector<8x64xf32>
    %397 = arith.mulf %392, %396 : vector<8x64xf32>
    %398 = arith.index_cast %c7_i32_106 : i32 to index
    %c0_116 = arith.constant 0 : index
    %c0_117 = arith.constant 0 : index
    %399 = vector.load %arg2[%398, %c0_116, %c0_117] : memref<8x8x1xf32, #tpu.memory_space<vmem>>, vector<1x8x1xf32>
    %400 = vector.shape_cast %399 : vector<1x8x1xf32> to vector<8x1xf32>
    %401 = arith.index_cast %366 : i32 to index
    %c0_118 = arith.constant 0 : index
    %c0_119 = arith.constant 0 : index
    %402 = vector.load %arg2[%401, %c0_118, %c0_119] : memref<8x8x1xf32, #tpu.memory_space<vmem>>, vector<1x8x1xf32>
    %403 = vector.shape_cast %402 : vector<1x8x1xf32> to vector<8x1xf32>
    %404 = vector.shape_cast %35 : vector<1x64xi1> to vector<1x64xi1>
    %405 = vector.broadcast %404 : vector<1x64xi1> to vector<8x64xi1>
    %406 = vector.shape_cast %400 : vector<8x1xf32> to vector<8x1xf32>
    %407 = vector.broadcast %406 : vector<8x1xf32> to vector<8x64xf32>
    %408 = vector.shape_cast %403 : vector<8x1xf32> to vector<8x1xf32>
    %409 = vector.broadcast %408 : vector<8x1xf32> to vector<8x64xf32>
    %410 = arith.select %405, %407, %409 : vector<8x64xi1>, vector<8x64xf32>
    %411 = arith.mulf %410, %397 : vector<8x64xf32>
    %412 = arith.addf %365, %411 : vector<8x64xf32>
    %c8_i32 = arith.constant 8 : i32
    %c0_120 = arith.constant 0 : index
    %c0_121 = arith.constant 0 : index
    %c0_122 = arith.constant 0 : index
    %413 = vector.load %arg2[%c0_120, %c0_121, %c0_122] : memref<8x8x1xf32, #tpu.memory_space<vmem>>, vector<8x8x1xf32>
    %cst_123 = arith.constant dense<0.000000e+00> : vector<8x1xf32>
    %414 = vector.multi_reduction <add>, %413, %cst_123 [0] : vector<8x8x1xf32> to vector<8x1xf32>
    %cst_124 = arith.constant 0.000000e+00 : f32
    %415 = vector.broadcast %cst_124 : f32 to vector<8x1xf32>
    %416 = arith.cmpf ogt, %414, %415 : vector<8x1xf32>
    %cst_125 = arith.constant 1.000000e+00 : f32
    %417 = vector.broadcast %cst_125 : f32 to vector<8x1xf32>
    %418 = arith.select %416, %414, %417 : vector<8x1xi1>, vector<8x1xf32>
    %cst_126 = arith.constant 0.000000e+00 : f32
    %419 = vector.broadcast %cst_126 : f32 to vector<8x1xf32>
    %420 = arith.cmpf ogt, %414, %419 : vector<8x1xf32>
    %421 = vector.broadcast %418 : vector<8x1xf32> to vector<8x64xf32>
    %422 = arith.divf %412, %421 : vector<8x64xf32>
    %cst_127 = arith.constant 0.000000e+00 : f32
    %423 = vector.shape_cast %420 : vector<8x1xi1> to vector<8x1xi1>
    %424 = vector.broadcast %423 : vector<8x1xi1> to vector<8x64xi1>
    %425 = vector.broadcast %cst_127 : f32 to vector<8x64xf32>
    %426 = arith.select %424, %422, %425 : vector<8x64xi1>, vector<8x64xf32>
    %cst_128 = arith.constant 0.000000e+00 : f32
    %427 = vector.broadcast %cst_128 : f32 to vector<8x64xf32>
    %428 = tpu.concatenate %426, %427 in 1 : vector<8x64xf32>, vector<8x64xf32> -> vector<8x128xf32>
    %c0_129 = arith.constant 0 : index
    %c0_130 = arith.constant 0 : index
    %429 = vector.load %arg6[%c0_129, %c0_130] : memref<8x128xf32, #tpu.memory_space<vmem>>, vector<8x128xf32>
    tpu.vector_store %arg6[%c0_129, %c0_130], %428 {strides = array<i32>} : memref<8x128xf32, #tpu.memory_space<vmem>>, vector<8x128xf32>,
    return
  }
  func.func @transform_0(%arg0: i32) -> (i32, i32, i32) {
    %c0_i32 = arith.constant 0 : i32
    %c0_i32_0 = arith.constant 0 : i32
    %c0_i32_1 = arith.constant 0 : i32
    return %c0_i32, %arg0, %c0_i32_0 : i32, i32, i32
  }
  func.func @transform_1(%arg0: i32) -> (i32, i32, i32) {
    %c0_i32 = arith.constant 0 : i32
    %c0_i32_0 = arith.constant 0 : i32
    %c0_i32_1 = arith.constant 0 : i32
    return %c0_i32, %arg0, %c0_i32_0 : i32, i32, i32
  }
  func.func @transform_2(%arg0: i32) -> (i32, i32) {
    %c0_i32 = arith.constant 0 : i32
    %c0_i32_0 = arith.constant 0 : i32
    %c0_i32_1 = arith.constant 0 : i32
    return %c0_i32, %c0_i32_0 : i32, i32
  }
  func.func @transform_3(%arg0: i32) -> (i32, i32) {
    %c0_i32 = arith.constant 0 : i32
    %c0_i32_0 = arith.constant 0 : i32
    %c0_i32_1 = arith.constant 0 : i32
    return %c0_i32, %c0_i32_0 : i32, i32
  }
  func.func @transform_4(%arg0: i32) -> (i32, i32) {
    %c0_i32 = arith.constant 0 : i32
    %c0_i32_0 = arith.constant 0 : i32
    %c0_i32_1 = arith.constant 0 : i32
    return %c0_i32, %c0_i32_0 : i32, i32
  }
  func.func @transform_5(%arg0: i32) -> (i32, i32) {
    %c0_i32 = arith.constant 0 : i32
    %c0_i32_0 = arith.constant 0 : i32
    return %arg0, %c0_i32 : i32, i32
  }
}

</mosaic_0001>

<llo_original>
// kernel: tpu_custom_call.1
$region0: #{tpu_custom_call.1}
  #allocation0 [shape = 'u32[]', space=smem, size = 0x4, offset = 0x4, fixed_abs, tag = 'smem constant byte address 0x4 - core index']
  #allocation1 [shape = 'u32[144,128]{1,0:T(1,128)}', space=vmem, size = 0x12000, scoped, tag = 'internal scratch']
  #allocation2 [shape = 'f32[8,8,256]{2,1,0:T(8,128)}', space=vmem, size = 0x10000, scoped, tag = 'scratch operand']
  %s0 = inlined_call_operand.hbm [shape: bf16[8,8,32], index: 0, kind: input, shape index: {}]
  %s1 = inlined_call_operand.vmem [shape: f32[8,8,1], index: 1, kind: input, shape index: {}]
  %s2 = inlined_call_operand.hbm [shape: bf16[32,256], index: 2, kind: input, shape index: {}]
  %s3 = inlined_call_operand.vmem [shape: bf16[64,256], index: 3, kind: input, shape index: {}]
  %s4 = inlined_call_operand.vmem [shape: f32[1,256], index: 4, kind: input, shape index: {}]
  %s5 = inlined_call_operand.hbm [shape: f32[8,128], index: 5, kind: output, shape index: {}]
  %s6 = sld [smem:[#allocation0]]
  $region38: #{tpu_custom_call.1} parent=0
    _
  %s8 = ssub.s32 1, %s6
  %s9 = scalar_select 0, %s8, %s6
  $region1: #{tpu_custom_call.1} parent=0
    #allocation3 [shape = 'u8[16384]{0}', space=vmem, size = 0x4000, scoped, tag = 'input window, operand 0, single buffered']
    #allocation4 [shape = 's32[1]{0}', space=sflag, size = 0x4, scoped, tag = 'scoped memory for tpu_custom_call.1']
    #allocation5 [shape = 's32[1]{0}', space=sflag, size = 0x4, scoped, tag = 'scoped memory for tpu_custom_call.1']
    #allocation6 [shape = 'u8[16384]{0}', space=vmem, size = 0x4000, scoped, tag = 'input window, operand 2, single buffered']
    #allocation7 [shape = 's32[1]{0}', space=sflag, size = 0x4, scoped, tag = 'scoped memory for tpu_custom_call.1']
    #allocation8 [shape = 'u8[4096]{0}', space=vmem, size = 0x1000, scoped, tag = 'output window, operand 0, single buffered']
    %10 = vsyncpa [#allocation4], 0
    %11 = vsyncpa [#allocation7], 0
    %12 = vsyncpa [#allocation5], 0
    // Predicated region
    $region2: #{tpu_custom_call.1} parent=1 // pred_check
      _
    $region3: #{tpu_custom_call.1} parent=1 // pred_check_branch
      %14 = sbr.rel (0) target = $region5
    $region4: #{tpu_custom_call.1} parent=1 // pred_region
      %s16 = ssub.s32 512, 512
      %17 = vsyncadd [#allocation4], %s16
      %s18 = sshll.u32 [#allocation3], 4
      %s19 = int_to_ptr.vmem [resolvable:$true] %s18
      %24 = dma.hbm_to_vmem [thread:$0]  %s0, 512, %s19, [#allocation4], 64, 64, 4
    $region5: #{tpu_custom_call.1} parent=1 // pred_fallthru
      _
    // Predicated region
    $region6: #{tpu_custom_call.1} parent=1 // pred_check
      _
    $region7: #{tpu_custom_call.1} parent=1 // pred_check_branch
      %26 = sbr.rel (0) target = $region9
    $region8: #{tpu_custom_call.1} parent=1 // pred_region
      _
    $region9: #{tpu_custom_call.1} parent=1 // pred_fallthru
      _
    // Predicated region
    $region10: #{tpu_custom_call.1} parent=1 // pred_check
      _
    $region11: #{tpu_custom_call.1} parent=1 // pred_check_branch
      %28 = sbr.rel (0) target = $region13
    $region12: #{tpu_custom_call.1} parent=1 // pred_region
      %s30 = ssub.s32 512, 512
      %31 = vsyncadd [#allocation7], %s30
      %s32 = sshll.u32 [#allocation6], 4
      %s33 = int_to_ptr.vmem [resolvable:$true] %s32
      %38 = dma.hbm_to_vmem [thread:$0]  %s2, 512, %s33, [#allocation7], 128, 128, 8
    $region13: #{tpu_custom_call.1} parent=1 // pred_fallthru
      _
    // Predicated region
    $region14: #{tpu_custom_call.1} parent=1 // pred_check
      _
    $region15: #{tpu_custom_call.1} parent=1 // pred_check_branch
      %40 = sbr.rel (0) target = $region17
    $region16: #{tpu_custom_call.1} parent=1 // pred_region
      _
    $region17: #{tpu_custom_call.1} parent=1 // pred_fallthru
      _
    // Predicated region
    $region18: #{tpu_custom_call.1} parent=1 // pred_check
      _
    $region19: #{tpu_custom_call.1} parent=1 // pred_check_branch
      %42 = sbr.rel (0) target = $region21
    $region20: #{tpu_custom_call.1} parent=1 // pred_region
      _
    $region21: #{tpu_custom_call.1} parent=1 // pred_fallthru
      _
    // Predicated region
    $region22: #{tpu_custom_call.1} parent=1 // pred_check
      _
    $region23: #{tpu_custom_call.1} parent=1 // pred_check_branch
      %44 = sbr.rel (0) target = $region25
    $region24: #{tpu_custom_call.1} parent=1 // pred_region
      %45 = dma.done [#allocation4], 512
    $region25: #{tpu_custom_call.1} parent=1 // pred_fallthru
      _
    // Predicated region
    $region26: #{tpu_custom_call.1} parent=1 // pred_check
      _
    $region27: #{tpu_custom_call.1} parent=1 // pred_check_branch
      %47 = sbr.rel (0) target = $region29
    $region28: #{tpu_custom_call.1} parent=1 // pred_region
      %48 = dma.done [#allocation7], 512
    $region29: #{tpu_custom_call.1} parent=1 // pred_fallthru
      _
    %v50 = vld [vmem:[#allocation3] sm:$0xf]
    %v51 = vld [vmem:[#allocation3 + $0x4] sm:$0xf]
    %v52 = vld [vmem:[#allocation3 + $0x8] sm:$0xf]
    %v53 = vld [vmem:[#allocation3 + $0xc] sm:$0xf]
    %v54 = vld [vmem:[#allocation3 + $0x10] sm:$0xf]
    %v55 = vld [vmem:[#allocation3 + $0x14] sm:$0xf]
    %v56 = vld [vmem:[#allocation3 + $0x18] sm:$0xf]
    %v57 = vld [vmem:[#allocation3 + $0x1c] sm:$0xf]
    %v58 = vld [vmem:[#allocation6] sm:$0xff]
    %v59 = vld [vmem:[#allocation6 + $0x8] sm:$0xff]
    %v60 = vld [vmem:[#allocation6 + $0x10] sm:$0xff]
    %v61 = vld [vmem:[#allocation6 + $0x18] sm:$0xff]
    %v62 = vld [vmem:[%s4] sm:$0x3]
    %v64 = vlaneseq
    %v65 = vshrl.u32 %v64, 7
    %v66 = vsub.s32 0, %v65
    %v67 = vrot.slane %v62, %v66
    %v68 = vlaneseq
    %v69 = vshrl.u32 %v68, 7
    %v70 = vsub.s32 1, %v69
    %v71 = vrot.slane %v62, %v70
    %v82 = vunpack.c.l.b16 %v50
    %v83 = vunpack.c.l.b16 %v51
    %v84 = vunpack.c.l.b16 %v52
    %v85 = vunpack.c.l.b16 %v53
    %v86 = vunpack.c.l.b16 %v54
    %v87 = vunpack.c.l.b16 %v55
    %v88 = vunpack.c.l.b16 %v56
    %v89 = vunpack.c.l.b16 %v57
    %v90 = vpack.c.b16 %v83, %v82
    %v91 = vpack.c.b16 %v85, %v84
    %v92 = vpack.c.b16 %v87, %v86
    %v93 = vpack.c.b16 %v89, %v88
    %v98 = vunpack.c.l.b16 %v58
    %v99 = vunpack.c.h.b16 %v58
    %v100 = vunpack.c.l.b16 %v59
    %v101 = vunpack.c.h.b16 %v59
    %v102 = vunpack.c.l.b16 %v60
    %v103 = vunpack.c.h.b16 %v60
    %v104 = vunpack.c.l.b16 %v61
    %v105 = vunpack.c.h.b16 %v61
    %v106 = vpack.c.b16 %v100, %v98
    %v107 = vpack.c.b16 %v101, %v99
    %v108 = vpack.c.b16 %v104, %v102
    %v109 = vpack.c.b16 %v105, %v103
    %vm114 = vcmask 261120
    %v116 = vsel %vm114, %v90, 0
    %v119 = vsel %vm114, %v91, 0
    %v122 = vsel %vm114, %v92, 0
    %v125 = vsel %vm114, %v93, 0
    %127 = vmatprep.subr.bf16.mxu0 %v107
    %128 = vmatpush1.bf16.msra.mxu0 %v106
    %129 = vmatprep.subr.bf16.mxu0 %v109
    %130 = vmatpush1.bf16.msra.mxu0 %v108
    %131 = vmatprep.subr.bf16.mxu0 0
    %132 = vmatpush1.bf16.msra.mxu0 0
    %133 = vmatprep.subr.bf16.mxu0 0
    %134 = vmatpush1.bf16.msra.mxu0 0
    %135 = vmatprep.subr.bf16.mxu0 0
    %136 = vmatpush1.bf16.msra.mxu0 0
    %137 = vmatprep.subr.bf16.mxu0 0
    %138 = vmatpush1.bf16.msra.mxu0 0
    %139 = vmatprep.subr.bf16.mxu0 0
    %140 = vmatpush1.bf16.msra.mxu0 0
    %141 = vmatprep.subr.bf16.mxu0 0
    %142 = vmatpush1.bf16.msra.mxu0 0
    %143 = vmatprep.subr.bf16.mxu0 0
    %144 = vmatpush1.bf16.msra.mxu0 0
    %145 = vmatprep.subr.bf16.mxu0 0
    %146 = vmatpush1.bf16.msra.mxu0 0
    %147 = vmatprep.subr.bf16.mxu0 0
    %148 = vmatpush1.bf16.msra.mxu0 0
    %149 = vmatprep.subr.bf16.mxu0 0
    %150 = vmatpush1.bf16.msra.mxu0 0
    %151 = vmatprep.subr.bf16.mxu0 0
    %152 = vmatpush1.bf16.msra.mxu0 0
    %153 = vmatprep.subr.bf16.mxu0 0
    %154 = vmatpush1.bf16.msra.mxu0 0
    %155 = vmatprep.subr.bf16.mxu0 0
    %156 = vmatpush1.bf16.msra.mxu0 0
    %157 = vmatprep.subr.bf16.mxu0 0
    %158 = vmatpush1.bf16.msra.mxu0 0
    %159 = vmatprep.mubr.bf16.mxu0 0
    %160 = vmatmul.mubr.bf16.gmra.mrb[0].mxu0 %v116
    %v161 = vpop.f32.mrb[0].mxu0
    %v162 = vadd.f32 %v67, %v161
    %v163 = vpop.f32.mrb[0].mxu0
    %v164 = vadd.f32 %v71, %v163
    %v165 = vpop.f32.mrb[0].mxu0
    %v166 = vadd.f32 %v67, %v165
    %v167 = vpop.f32.mrb[0].mxu0
    %v168 = vadd.f32 %v71, %v167
    %169 = vmatprep.mubr.bf16.mxu0 0
    %170 = vmatmul.mubr.bf16.gmra.mrb[0].mxu0 %v119
    %v171 = vpop.f32.mrb[0].mxu0
    %v172 = vadd.f32 %v67, %v171
    %v173 = vpop.f32.mrb[0].mxu0
    %v174 = vadd.f32 %v71, %v173
    %v175 = vpop.f32.mrb[0].mxu0
    %v176 = vadd.f32 %v67, %v175
    %v177 = vpop.f32.mrb[0].mxu0
    %v178 = vadd.f32 %v71, %v177
    %179 = vmatprep.mubr.bf16.mxu0 0
    %180 = vmatmul.mubr.bf16.gmra.mrb[0].mxu0 %v122
    %v181 = vpop.f32.mrb[0].mxu0
    %v182 = vadd.f32 %v67, %v181
    %v183 = vpop.f32.mrb[0].mxu0
    %v184 = vadd.f32 %v71, %v183
    %v185 = vpop.f32.mrb[0].mxu0
    %v186 = vadd.f32 %v67, %v185
    %v187 = vpop.f32.mrb[0].mxu0
    %v188 = vadd.f32 %v71, %v187
    %189 = vmatprep.mubr.bf16.mxu0 0
    %190 = vmatmul.mubr.bf16.gmra.mrb[0].mxu0 %v125
    %v191 = vpop.f32.mrb[0].mxu0
    %v192 = vadd.f32 %v67, %v191
    %v193 = vpop.f32.mrb[0].mxu0
    %v194 = vadd.f32 %v71, %v193
    %v195 = vpop.f32.mrb[0].mxu0
    %v196 = vadd.f32 %v67, %v195
    %v197 = vpop.f32.mrb[0].mxu0
    %v198 = vadd.f32 %v71, %v197
    %199 = vdwg.mxu0
    %200 = vst [vmem:[#allocation2] sm:$0xff] %v162
    %201 = vst [vmem:[#allocation2 + $0x8] sm:$0xff] %v164
    %202 = vst [vmem:[#allocation2 + $0x10] sm:$0xff] %v166
    %203 = vst [vmem:[#allocation2 + $0x18] sm:$0xff] %v168
    %204 = vst [vmem:[#allocation2 + $0x20] sm:$0xff] %v172
    %205 = vst [vmem:[#allocation2 + $0x28] sm:$0xff] %v174
    %206 = vst [vmem:[#allocation2 + $0x30] sm:$0xff] %v176
    %207 = vst [vmem:[#allocation2 + $0x38] sm:$0xff] %v178
    %208 = vst [vmem:[#allocation2 + $0x40] sm:$0xff] %v182
    %209 = vst [vmem:[#allocation2 + $0x48] sm:$0xff] %v184
    %210 = vst [vmem:[#allocation2 + $0x50] sm:$0xff] %v186
    %211 = vst [vmem:[#allocation2 + $0x58] sm:$0xff] %v188
    %212 = vst [vmem:[#allocation2 + $0x60] sm:$0xff] %v192
    %213 = vst [vmem:[#allocation2 + $0x68] sm:$0xff] %v194
    %214 = vst [vmem:[#allocation2 + $0x70] sm:$0xff] %v196
    %215 = vst [vmem:[#allocation2 + $0x78] sm:$0xff] %v198
    %v216 = vlaneseq
    %v217 = vand.u32 %v216, 127
    %v218 = vadd.s32 %v217, 128
    %vm219 = vcmp.lt.s32.totalorder %v217, 0
    %v220 = vsub.s32 0, %v217
    %v221 = vsel %vm219, %v220, %v217
    %v222 = vshrl.u32 %v221, 6
    %v223 = vand.u32 %v221, 63
    %v224 = vsub.s32 0, %v223
    %v225 = vsel %vm219, %v224, %v223
    %vm226 = vcmp.lt.s32.totalorder %v218, 0
    %v227 = vsub.s32 0, %v218
    %v228 = vsel %vm226, %v227, %v218
    %v229 = vshrl.u32 %v228, 6
    %v230 = vand.u32 %v228, 63
    %v231 = vsub.s32 0, %v230
    %v232 = vsel %vm226, %v231, %v230
    %vm233 = vcmp.ne.s32.totalorder %v225, 0
    %vm234 = vcmp.ne.s32.totalorder %v232, 0
    %vm235 = vcmp.lt.s32.totalorder %v225, 0
    %vm236 = vcmp.lt.s32.totalorder %v232, 0
    %vm237 = vmand %vm235, %vm233
    %vm238 = vmand %vm236, %vm234
    %v239 = vadd.s32 %v225, 64
    %v240 = vadd.s32 %v232, 64
    %v241 = vsel %vm237, %v239, %v225
    %v242 = vsel %vm238, %v240, %v232
    %vm243 = vcmp.lt.s32.totalorder %v241, 32
    %vm244 = vcmp.lt.s32.totalorder %v242, 32
    %vm245 = vcmp.ge.s32.totalorder %v217, 128
    %vm246 = vcmp.ge.s32.totalorder %v218, 128
    %vm247 = vcmp.lt.s32.totalorder %v217, 192
    %vm248 = vcmp.lt.s32.totalorder %v218, 192
    %vm249 = vmand %vm245, %vm247
    %vm250 = vmand %vm246, %vm248
    %vm251 = vcmp.lt.s32.totalorder %v217, 32
    %v252 = vld [vmem:[#allocation2] sm:$0xff]
    %v253 = vld [vmem:[#allocation2 + $0x8] sm:$0xff]
    %s254 = scalar_lea.vmem [#allocation2], 112
    %v255 = vld [vmem:[%s254] sm:$0xff]
    %v256 = vld [vmem:[%s254 + $0x8] sm:$0xff]
    %v257 = vsel %vm243, 1, 0
    %v258 = vsel %vm244, 1, 0
    %vm259 = vcmp.eq.s32.totalorder %v257, 1
    %vm260 = vcmp.eq.s32.totalorder %v258, 1
    %v261 = vsel %vm259, %v252, %v255
    %v262 = vsel %vm260, %v253, %v256
    %v263 = vld [vmem:[%s3] sm:$0xff]
    %v264 = vld [vmem:[%s3 + $0x8] sm:$0xff]
    %v265 = vld [vmem:[%s3 + $0x10] sm:$0xff]
    %v266 = vld [vmem:[%s3 + $0x18] sm:$0xff]
    %v267 = vld [vmem:[%s3 + $0x20] sm:$0xff]
    %v268 = vld [vmem:[%s3 + $0x28] sm:$0xff]
    %v269 = vld [vmem:[%s3 + $0x30] sm:$0xff]
    %v270 = vld [vmem:[%s3 + $0x38] sm:$0xff]
    %v279 = vunpack.c.l.b16 %v263
    %v280 = vunpack.c.h.b16 %v263
    %v281 = vunpack.c.l.b16 %v264
    %v282 = vunpack.c.h.b16 %v264
    %v283 = vunpack.c.l.b16 %v265
    %v284 = vunpack.c.h.b16 %v265
    %v285 = vunpack.c.l.b16 %v266
    %v286 = vunpack.c.h.b16 %v266
    %v287 = vunpack.c.l.b16 %v267
    %v288 = vunpack.c.h.b16 %v267
    %v289 = vunpack.c.l.b16 %v268
    %v290 = vunpack.c.h.b16 %v268
    %v291 = vunpack.c.l.b16 %v269
    %v292 = vunpack.c.h.b16 %v269
    %v293 = vunpack.c.l.b16 %v270
    %v294 = vunpack.c.h.b16 %v270
    %v295 = vpack.c.b16 %v281, %v279
    %v296 = vpack.c.b16 %v282, %v280
    %v297 = vpack.c.b16 %v285, %v283
    %v298 = vpack.c.b16 %v286, %v284
    %v299 = vpack.c.b16 %v289, %v287
    %v300 = vpack.c.b16 %v290, %v288
    %v301 = vpack.c.b16 %v293, %v291
    %v302 = vpack.c.b16 %v294, %v292
    %vm311 = vcmask 523264
    %v313 = vsel %vm311, 0, 0
    %315 = vmatprep.subr.bf16.mxu0 %v296
    %316 = vmatpush1.bf16.msra.mxu0 %v295
    %317 = vmatprep.subr.bf16.mxu0 %v298
    %318 = vmatpush1.bf16.msra.mxu0 %v297
    %319 = vmatprep.subr.bf16.mxu0 %v300
    %320 = vmatpush1.bf16.msra.mxu0 %v299
    %321 = vmatprep.subr.bf16.mxu0 %v302
    %322 = vmatpush1.bf16.msra.mxu0 %v301
    %323 = vmatprep.subr.bf16.mxu0 0
    %324 = vmatpush1.bf16.msra.mxu0 0
    %325 = vmatprep.subr.bf16.mxu0 0
    %326 = vmatpush1.bf16.msra.mxu0 0
    %327 = vmatprep.subr.bf16.mxu0 0
    %328 = vmatpush1.bf16.msra.mxu0 0
    %329 = vmatprep.subr.bf16.mxu0 0
    %330 = vmatpush1.bf16.msra.mxu0 0
    %331 = vmatprep.subr.bf16.mxu0 0
    %332 = vmatpush1.bf16.msra.mxu0 0
    %333 = vmatprep.subr.bf16.mxu0 0
    %334 = vmatpush1.bf16.msra.mxu0 0
    %335 = vmatprep.subr.bf16.mxu0 0
    %336 = vmatpush1.bf16.msra.mxu0 0
    %337 = vmatprep.subr.bf16.mxu0 0
    %338 = vmatpush1.bf16.msra.mxu0 0
    %339 = vmatprep.subr.bf16.mxu0 0
    %340 = vmatpush1.bf16.msra.mxu0 0
    %341 = vmatprep.subr.bf16.mxu0 0
    %342 = vmatpush1.bf16.msra.mxu0 0
    %343 = vmatprep.subr.bf16.mxu0 0
    %344 = vmatpush1.bf16.msra.mxu0 0
    %345 = vmatprep.subr.bf16.mxu0 0
    %346 = vmatpush1.bf16.msra.mxu0 0
    %347 = vmatprep.mubr.bf16.mxu0 0
    %348 = vmatmul.mubr.bf16.gmra.mrb[0].mxu0 %v313
    %v349 = vpop.f32.mrb[0].mxu0
    %v350 = vadd.f32 0.0, %v349
    %v351 = vpop.f32.mrb[0].mxu0
    %v352 = vadd.f32 0.0, %v351
    %v353 = vpop.f32.mrb[0].mxu0
    %v354 = vpop.f32.mrb[0].mxu0
    %355 = vdwg.mxu0
    %v356 = vadd.f32 %v261, %v350
    %v357 = vadd.f32 %v262, %v352
    %v358 = vtanh.pop %v356
    %v359 = vtanh.pop %v357
    %v360 = vxor.u32 %v356, 2147483648
    %v361 = vxor.u32 %v357, 2147483648
    %v362 = vmul.f32 %v360, 1.442695
    %v363 = vpow.pop %v362
    %v364 = vmul.f32 %v361, 1.442695
    %v365 = vpow.pop %v364
    %v366 = vadd.f32 %v363, 1.0
    %v367 = vadd.f32 %v365, 1.0
    %v368 = vrcp.pop %v366
    %v369 = vmul.f32 1.0, %v368
    %v370 = vrcp.pop %v367
    %v371 = vmul.f32 1.0, %v370
    %v372 = vsel %vm249, 1, 0
    %v373 = vsel %vm250, 1, 0
    %vm374 = vcmp.eq.s32.totalorder %v372, 1
    %vm375 = vcmp.eq.s32.totalorder %v373, 1
    %v376 = vsel %vm374, %v358, %v369
    %v377 = vsel %vm375, %v359, %v371
    %v378 = vmul.f32 %v376, 0.0
    %v379 = vmul.f32 %v376, %v377
    %381 = vrot.lane.b32.xlu0 %v379, 64
    %v382 = vpop.permute.xlu0 %381
    %v384 = vadd.f32 %v378, %v382
    %v385 = vtanh.pop %v384
    %v386 = vmul.f32 %v377, %v385
    %v387 = vld [vmem:[%s1] sm:$0xff]
    %s388 = scalar_lea.vmem %s1, 56
    %v389 = vld [vmem:[%s388] sm:$0xff]
    %v390 = vsel %vm251, 1, 0
    %vm391 = vcmp.eq.s32.totalorder %v390, 1
    %393 = vset.pattern.permute.xlu0 0
    %394 = vperm.xlu0 %393, %v387
    %v395 = vpop.permute.xlu0 %394
    %398 = vset.pattern.permute.xlu0 0
    %399 = vperm.xlu0 %398, %v389
    %v400 = vpop.permute.xlu0 %399
    %v402 = vsel %vm391, %v395, %v400
    %404 = vrot.lane.b32.xlu0 %v386, 64
    %v405 = vpop.permute.xlu0 %404
    %v407 = vmul.f32 %v402, %v405
    %v408 = vadd.f32 %v407, 0.0
    %s409 = scalar_lea.vmem [#allocation2], 16
    %v410 = vld [vmem:[%s409] sm:$0xff]
    %v411 = vld [vmem:[%s409 + $0x8] sm:$0xff]
    %s412 = scalar_lea.vmem [#allocation2], 96
    %v413 = vld [vmem:[%s412] sm:$0xff]
    %v414 = vld [vmem:[%s412 + $0x8] sm:$0xff]
    %v415 = vsel %vm259, %v410, %v413
    %v416 = vsel %vm260, %v411, %v414
    %v417 = vpack.c.bf16 %v386, %v386
    %419 = vrot.lane.b32.xlu0 %v417, 64
    %v420 = vpop.permute.xlu0 %419
    %v422 = vsel %vm311, %v420, 0
    %424 = vmatprep.subr.bf16.mxu0 %v296
    %425 = vmatpush1.bf16.msra.mxu0 %v295
    %426 = vmatprep.subr.bf16.mxu0 %v298
    %427 = vmatpush1.bf16.msra.mxu0 %v297
    %428 = vmatprep.subr.bf16.mxu0 %v300
    %429 = vmatpush1.bf16.msra.mxu0 %v299
    %430 = vmatprep.subr.bf16.mxu0 %v302
    %431 = vmatpush1.bf16.msra.mxu0 %v301
    %432 = vmatprep.subr.bf16.mxu0 0
    %433 = vmatpush1.bf16.msra.mxu0 0
    %434 = vmatprep.subr.bf16.mxu0 0
    %435 = vmatpush1.bf16.msra.mxu0 0
    %436 = vmatprep.subr.bf16.mxu0 0
    %437 = vmatpush1.bf16.msra.mxu0 0
    %438 = vmatprep.subr.bf16.mxu0 0
    %439 = vmatpush1.bf16.msra.mxu0 0
    %440 = vmatprep.subr.bf16.mxu0 0
    %441 = vmatpush1.bf16.msra.mxu0 0
    %442 = vmatprep.subr.bf16.mxu0 0
    %443 = vmatpush1.bf16.msra.mxu0 0
    %444 = vmatprep.subr.bf16.mxu0 0
    %445 = vmatpush1.bf16.msra.mxu0 0
    %446 = vmatprep.subr.bf16.mxu0 0
    %447 = vmatpush1.bf16.msra.mxu0 0
    %448 = vmatprep.subr.bf16.mxu0 0
    %449 = vmatpush1.bf16.msra.mxu0 0
    %450 = vmatprep.subr.bf16.mxu0 0
    %451 = vmatpush1.bf16.msra.mxu0 0
    %452 = vmatprep.subr.bf16.mxu0 0
    %453 = vmatpush1.bf16.msra.mxu0 0
    %454 = vmatprep.subr.bf16.mxu0 0
    %455 = vmatpush1.bf16.msra.mxu0 0
    %456 = vmatprep.mubr.bf16.mxu0 0
    %457 = vmatmul.mubr.bf16.gmra.mrb[0].mxu0 %v422
    %v458 = vpop.f32.mrb[0].mxu0
    %v459 = vadd.f32 0.0, %v458
    %v460 = vpop.f32.mrb[0].mxu0
    %v461 = vadd.f32 0.0, %v460
    %v462 = vpop.f32.mrb[0].mxu0
    %v463 = vpop.f32.mrb[0].mxu0
    %464 = vdwg.mxu0
    %v465 = vadd.f32 %v415, %v459
    %v466 = vadd.f32 %v416, %v461
    %v467 = vtanh.pop %v465
    %v468 = vtanh.pop %v466
    %v469 = vxor.u32 %v465, 2147483648
    %v470 = vxor.u32 %v466, 2147483648
    %v471 = vmul.f32 %v469, 1.442695
    %v472 = vpow.pop %v471
    %v473 = vmul.f32 %v470, 1.442695
    %v474 = vpow.pop %v473
    %v475 = vadd.f32 %v472, 1.0
    %v476 = vadd.f32 %v474, 1.0
    %v477 = vrcp.pop %v475
    %v478 = vmul.f32 1.0, %v477
    %v479 = vrcp.pop %v476
    %v480 = vmul.f32 1.0, %v479
    %v481 = vsel %vm374, %v467, %v478
    %v482 = vsel %vm375, %v468, %v480
    %v483 = vmul.f32 %v481, %v384
    %v484 = vmul.f32 %v481, %v482
    %486 = vrot.lane.b32.xlu0 %v484, 64
    %v487 = vpop.permute.xlu0 %486
    %v489 = vadd.f32 %v483, %v487
    %v490 = vtanh.pop %v489
    %v491 = vmul.f32 %v482, %v490
    %s492 = scalar_lea.vmem %s1, 8
    %v493 = vld [vmem:[%s492] sm:$0xff]
    %s494 = scalar_lea.vmem %s1, 48
    %v495 = vld [vmem:[%s494] sm:$0xff]
    %497 = vset.pattern.permute.xlu0 0
    %498 = vperm.xlu0 %497, %v493
    %v499 = vpop.permute.xlu0 %498
    %502 = vset.pattern.permute.xlu0 0
    %503 = vperm.xlu0 %502, %v495
    %v504 = vpop.permute.xlu0 %503
    %v506 = vsel %vm391, %v499, %v504
    %508 = vrot.lane.b32.xlu0 %v491, 64
    %v509 = vpop.permute.xlu0 %508
    %v511 = vmul.f32 %v506, %v509
    %v512 = vadd.f32 %v408, %v511
    %s513 = scalar_lea.vmem [#allocation2], 32
    %v514 = vld [vmem:[%s513] sm:$0xff]
    %v515 = vld [vmem:[%s513 + $0x8] sm:$0xff]
    %s516 = scalar_lea.vmem [#allocation2], 80
    %v517 = vld [vmem:[%s516] sm:$0xff]
    %v518 = vld [vmem:[%s516 + $0x8] sm:$0xff]
    %v519 = vsel %vm259, %v514, %v517
    %v520 = vsel %vm260, %v515, %v518
    %v521 = vpack.c.bf16 %v491, %v491
    %523 = vrot.lane.b32.xlu0 %v521, 64
    %v524 = vpop.permute.xlu0 %523
    %v526 = vsel %vm311, %v524, 0
    %528 = vmatprep.subr.bf16.mxu0 %v296
    %529 = vmatpush1.bf16.msra.mxu0 %v295
    %530 = vmatprep.subr.bf16.mxu0 %v298
    %531 = vmatpush1.bf16.msra.mxu0 %v297
    %532 = vmatprep.subr.bf16.mxu0 %v300
    %533 = vmatpush1.bf16.msra.mxu0 %v299
    %534 = vmatprep.subr.bf16.mxu0 %v302
    %535 = vmatpush1.bf16.msra.mxu0 %v301
    %536 = vmatprep.subr.bf16.mxu0 0
    %537 = vmatpush1.bf16.msra.mxu0 0
    %538 = vmatprep.subr.bf16.mxu0 0
    %539 = vmatpush1.bf16.msra.mxu0 0
    %540 = vmatprep.subr.bf16.mxu0 0
    %541 = vmatpush1.bf16.msra.mxu0 0
    %542 = vmatprep.subr.bf16.mxu0 0
    %543 = vmatpush1.bf16.msra.mxu0 0
    %544 = vmatprep.subr.bf16.mxu0 0
    %545 = vmatpush1.bf16.msra.mxu0 0
    %546 = vmatprep.subr.bf16.mxu0 0
    %547 = vmatpush1.bf16.msra.mxu0 0
    %548 = vmatprep.subr.bf16.mxu0 0
    %549 = vmatpush1.bf16.msra.mxu0 0
    %550 = vmatprep.subr.bf16.mxu0 0
    %551 = vmatpush1.bf16.msra.mxu0 0
    %552 = vmatprep.subr.bf16.mxu0 0
    %553 = vmatpush1.bf16.msra.mxu0 0
    %554 = vmatprep.subr.bf16.mxu0 0
    %555 = vmatpush1.bf16.msra.mxu0 0
    %556 = vmatprep.subr.bf16.mxu0 0
    %557 = vmatpush1.bf16.msra.mxu0 0
    %558 = vmatprep.subr.bf16.mxu0 0
    %559 = vmatpush1.bf16.msra.mxu0 0
    %560 = vmatprep.mubr.bf16.mxu0 0
    %561 = vmatmul.mubr.bf16.gmra.mrb[0].mxu0 %v526
    %v562 = vpop.f32.mrb[0].mxu0
    %v563 = vadd.f32 0.0, %v562
    %v564 = vpop.f32.mrb[0].mxu0
    %v565 = vadd.f32 0.0, %v564
    %v566 = vpop.f32.mrb[0].mxu0
    %v567 = vpop.f32.mrb[0].mxu0
    %568 = vdwg.mxu0
    %v569 = vadd.f32 %v519, %v563
    %v570 = vadd.f32 %v520, %v565
    %v571 = vtanh.pop %v569
    %v572 = vtanh.pop %v570
    %v573 = vxor.u32 %v569, 2147483648
    %v574 = vxor.u32 %v570, 2147483648
    %v575 = vmul.f32 %v573, 1.442695
    %v576 = vpow.pop %v575
    %v577 = vmul.f32 %v574, 1.442695
    %v578 = vpow.pop %v577
    %v579 = vadd.f32 %v576, 1.0
    %v580 = vadd.f32 %v578, 1.0
    %v581 = vrcp.pop %v579
    %v582 = vmul.f32 1.0, %v581
    %v583 = vrcp.pop %v580
    %v584 = vmul.f32 1.0, %v583
    %v585 = vsel %vm374, %v571, %v582
    %v586 = vsel %vm375, %v572, %v584
    %v587 = vmul.f32 %v585, %v489
    %v588 = vmul.f32 %v585, %v586
    %590 = vrot.lane.b32.xlu0 %v588, 64
    %v591 = vpop.permute.xlu0 %590
    %v593 = vadd.f32 %v587, %v591
    %v594 = vtanh.pop %v593
    %v595 = vmul.f32 %v586, %v594
    %s596 = scalar_lea.vmem %s1, 16
    %v597 = vld [vmem:[%s596] sm:$0xff]
    %s598 = scalar_lea.vmem %s1, 40
    %v599 = vld [vmem:[%s598] sm:$0xff]
    %601 = vset.pattern.permute.xlu0 0
    %602 = vperm.xlu0 %601, %v597
    %v603 = vpop.permute.xlu0 %602
    %606 = vset.pattern.permute.xlu0 0
    %607 = vperm.xlu0 %606, %v599
    %v608 = vpop.permute.xlu0 %607
    %v610 = vsel %vm391, %v603, %v608
    %612 = vrot.lane.b32.xlu0 %v595, 64
    %v613 = vpop.permute.xlu0 %612
    %v615 = vmul.f32 %v610, %v613
    %v616 = vadd.f32 %v512, %v615
    %s617 = scalar_lea.vmem [#allocation2], 48
    %v618 = vld [vmem:[%s617] sm:$0xff]
    %v619 = vld [vmem:[%s617 + $0x8] sm:$0xff]
    %s620 = scalar_lea.vmem [#allocation2], 64
    %v621 = vld [vmem:[%s620] sm:$0xff]
    %v622 = vld [vmem:[%s620 + $0x8] sm:$0xff]
    %v623 = vsel %vm259, %v618, %v621
    %v624 = vsel %vm260, %v619, %v622
    %v625 = vpack.c.bf16 %v595, %v595
    %627 = vrot.lane.b32.xlu0 %v625, 64
    %v628 = vpop.permute.xlu0 %627
    %v630 = vsel %vm311, %v628, 0
    %632 = vmatprep.subr.bf16.mxu0 %v296
    %633 = vmatpush1.bf16.msra.mxu0 %v295
    %634 = vmatprep.subr.bf16.mxu0 %v298
    %635 = vmatpush1.bf16.msra.mxu0 %v297
    %636 = vmatprep.subr.bf16.mxu0 %v300
    %637 = vmatpush1.bf16.msra.mxu0 %v299
    %638 = vmatprep.subr.bf16.mxu0 %v302
    %639 = vmatpush1.bf16.msra.mxu0 %v301
    %640 = vmatprep.subr.bf16.mxu0 0
    %641 = vmatpush1.bf16.msra.mxu0 0
    %642 = vmatprep.subr.bf16.mxu0 0
    %643 = vmatpush1.bf16.msra.mxu0 0
    %644 = vmatprep.subr.bf16.mxu0 0
    %645 = vmatpush1.bf16.msra.mxu0 0
    %646 = vmatprep.subr.bf16.mxu0 0
    %647 = vmatpush1.bf16.msra.mxu0 0
    %648 = vmatprep.subr.bf16.mxu0 0
    %649 = vmatpush1.bf16.msra.mxu0 0
    %650 = vmatprep.subr.bf16.mxu0 0
    %651 = vmatpush1.bf16.msra.mxu0 0
    %652 = vmatprep.subr.bf16.mxu0 0
    %653 = vmatpush1.bf16.msra.mxu0 0
    %654 = vmatprep.subr.bf16.mxu0 0
    %655 = vmatpush1.bf16.msra.mxu0 0
    %656 = vmatprep.subr.bf16.mxu0 0
    %657 = vmatpush1.bf16.msra.mxu0 0
    %658 = vmatprep.subr.bf16.mxu0 0
    %659 = vmatpush1.bf16.msra.mxu0 0
    %660 = vmatprep.subr.bf16.mxu0 0
    %661 = vmatpush1.bf16.msra.mxu0 0
    %662 = vmatprep.subr.bf16.mxu0 0
    %663 = vmatpush1.bf16.msra.mxu0 0
    %664 = vmatprep.mubr.bf16.mxu0 0
    %665 = vmatmul.mubr.bf16.gmra.mrb[0].mxu0 %v630
    %v666 = vpop.f32.mrb[0].mxu0
    %v667 = vadd.f32 0.0, %v666
    %v668 = vpop.f32.mrb[0].mxu0
    %v669 = vadd.f32 0.0, %v668
    %v670 = vpop.f32.mrb[0].mxu0
    %v671 = vpop.f32.mrb[0].mxu0
    %672 = vdwg.mxu0
    %v673 = vadd.f32 %v623, %v667
    %v674 = vadd.f32 %v624, %v669
    %v675 = vtanh.pop %v673
    %v676 = vtanh.pop %v674
    %v677 = vxor.u32 %v673, 2147483648
    %v678 = vxor.u32 %v674, 2147483648
    %v679 = vmul.f32 %v677, 1.442695
    %v680 = vpow.pop %v679
    %v681 = vmul.f32 %v678, 1.442695
    %v682 = vpow.pop %v681
    %v683 = vadd.f32 %v680, 1.0
    %v684 = vadd.f32 %v682, 1.0
    %v685 = vrcp.pop %v683
    %v686 = vmul.f32 1.0, %v685
    %v687 = vrcp.pop %v684
    %v688 = vmul.f32 1.0, %v687
    %v689 = vsel %vm374, %v675, %v686
    %v690 = vsel %vm375, %v676, %v688
    %v691 = vmul.f32 %v689, %v593
    %v692 = vmul.f32 %v689, %v690
    %694 = vrot.lane.b32.xlu0 %v692, 64
    %v695 = vpop.permute.xlu0 %694
    %v697 = vadd.f32 %v691, %v695
    %v698 = vtanh.pop %v697
    %v699 = vmul.f32 %v690, %v698
    %s700 = scalar_lea.vmem %s1, 24
    %v701 = vld [vmem:[%s700] sm:$0xff]
    %s702 = scalar_lea.vmem %s1, 32
    %v703 = vld [vmem:[%s702] sm:$0xff]
    %705 = vset.pattern.permute.xlu0 0
    %706 = vperm.xlu0 %705, %v701
    %v707 = vpop.permute.xlu0 %706
    %710 = vset.pattern.permute.xlu0 0
    %711 = vperm.xlu0 %710, %v703
    %v712 = vpop.permute.xlu0 %711
    %v714 = vsel %vm391, %v707, %v712
    %716 = vrot.lane.b32.xlu0 %v699, 64
    %v717 = vpop.permute.xlu0 %716
    %v719 = vmul.f32 %v714, %v717
    %v720 = vadd.f32 %v616, %v719
    %v721 = vsel %vm259, %v621, %v618
    %v722 = vsel %vm260, %v622, %v619
    %v723 = vpack.c.bf16 %v699, %v699
    %725 = vrot.lane.b32.xlu0 %v723, 64
    %v726 = vpop.permute.xlu0 %725
    %v728 = vsel %vm311, %v726, 0
    %730 = vmatprep.subr.bf16.mxu0 %v296
    %731 = vmatpush1.bf16.msra.mxu0 %v295
    %732 = vmatprep.subr.bf16.mxu0 %v298
    %733 = vmatpush1.bf16.msra.mxu0 %v297
    %734 = vmatprep.subr.bf16.mxu0 %v300
    %735 = vmatpush1.bf16.msra.mxu0 %v299
    %736 = vmatprep.subr.bf16.mxu0 %v302
    %737 = vmatpush1.bf16.msra.mxu0 %v301
    %738 = vmatprep.subr.bf16.mxu0 0
    %739 = vmatpush1.bf16.msra.mxu0 0
    %740 = vmatprep.subr.bf16.mxu0 0
    %741 = vmatpush1.bf16.msra.mxu0 0
    %742 = vmatprep.subr.bf16.mxu0 0
    %743 = vmatpush1.bf16.msra.mxu0 0
    %744 = vmatprep.subr.bf16.mxu0 0
    %745 = vmatpush1.bf16.msra.mxu0 0
    %746 = vmatprep.subr.bf16.mxu0 0
    %747 = vmatpush1.bf16.msra.mxu0 0
    %748 = vmatprep.subr.bf16.mxu0 0
    %749 = vmatpush1.bf16.msra.mxu0 0
    %750 = vmatprep.subr.bf16.mxu0 0
    %751 = vmatpush1.bf16.msra.mxu0 0
    %752 = vmatprep.subr.bf16.mxu0 0
    %753 = vmatpush1.bf16.msra.mxu0 0
    %754 = vmatprep.subr.bf16.mxu0 0
    %755 = vmatpush1.bf16.msra.mxu0 0
    %756 = vmatprep.subr.bf16.mxu0 0
    %757 = vmatpush1.bf16.msra.mxu0 0
    %758 = vmatprep.subr.bf16.mxu0 0
    %759 = vmatpush1.bf16.msra.mxu0 0
    %760 = vmatprep.subr.bf16.mxu0 0
    %761 = vmatpush1.bf16.msra.mxu0 0
    %762 = vmatprep.mubr.bf16.mxu0 0
    %763 = vmatmul.mubr.bf16.gmra.mrb[0].mxu0 %v728
    %v764 = vpop.f32.mrb[0].mxu0
    %v765 = vadd.f32 0.0, %v764
    %v766 = vpop.f32.mrb[0].mxu0
    %v767 = vadd.f32 0.0, %v766
    %v768 = vpop.f32.mrb[0].mxu0
    %v769 = vpop.f32.mrb[0].mxu0
    %770 = vdwg.mxu0
    %v771 = vadd.f32 %v721, %v765
    %v772 = vadd.f32 %v722, %v767
    %v773 = vtanh.pop %v771
    %v774 = vtanh.pop %v772
    %v775 = vxor.u32 %v771, 2147483648
    %v776 = vxor.u32 %v772, 2147483648
    %v777 = vmul.f32 %v775, 1.442695
    %v778 = vpow.pop %v777
    %v779 = vmul.f32 %v776, 1.442695
    %v780 = vpow.pop %v779
    %v781 = vadd.f32 %v778, 1.0
    %v782 = vadd.f32 %v780, 1.0
    %v783 = vrcp.pop %v781
    %v784 = vmul.f32 1.0, %v783
    %v785 = vrcp.pop %v782
    %v786 = vmul.f32 1.0, %v785
    %v787 = vsel %vm374, %v773, %v784
    %v788 = vsel %vm375, %v774, %v786
    %v789 = vmul.f32 %v787, %v697
    %v790 = vmul.f32 %v787, %v788
    %792 = vrot.lane.b32.xlu0 %v790, 64
    %v793 = vpop.permute.xlu0 %792
    %v795 = vadd.f32 %v789, %v793
    %v796 = vtanh.pop %v795
    %v797 = vmul.f32 %v788, %v796
    %v798 = vsel %vm391, %v712, %v707
    %800 = vrot.lane.b32.xlu0 %v797, 64
    %v801 = vpop.permute.xlu0 %800
    %v803 = vmul.f32 %v798, %v801
    %v804 = vadd.f32 %v720, %v803
    %v805 = vsel %vm259, %v517, %v514
    %v806 = vsel %vm260, %v518, %v515
    %v807 = vpack.c.bf16 %v797, %v797
    %809 = vrot.lane.b32.xlu0 %v807, 64
    %v810 = vpop.permute.xlu0 %809
    %v812 = vsel %vm311, %v810, 0
    %814 = vmatprep.subr.bf16.mxu0 %v296
    %815 = vmatpush1.bf16.msra.mxu0 %v295
    %816 = vmatprep.subr.bf16.mxu0 %v298
    %817 = vmatpush1.bf16.msra.mxu0 %v297
    %818 = vmatprep.subr.bf16.mxu0 %v300
    %819 = vmatpush1.bf16.msra.mxu0 %v299
    %820 = vmatprep.subr.bf16.mxu0 %v302
    %821 = vmatpush1.bf16.msra.mxu0 %v301
    %822 = vmatprep.subr.bf16.mxu0 0
    %823 = vmatpush1.bf16.msra.mxu0 0
    %824 = vmatprep.subr.bf16.mxu0 0
    %825 = vmatpush1.bf16.msra.mxu0 0
    %826 = vmatprep.subr.bf16.mxu0 0
    %827 = vmatpush1.bf16.msra.mxu0 0
    %828 = vmatprep.subr.bf16.mxu0 0
    %829 = vmatpush1.bf16.msra.mxu0 0
    %830 = vmatprep.subr.bf16.mxu0 0
    %831 = vmatpush1.bf16.msra.mxu0 0
    %832 = vmatprep.subr.bf16.mxu0 0
    %833 = vmatpush1.bf16.msra.mxu0 0
    %834 = vmatprep.subr.bf16.mxu0 0
    %835 = vmatpush1.bf16.msra.mxu0 0
    %836 = vmatprep.subr.bf16.mxu0 0
    %837 = vmatpush1.bf16.msra.mxu0 0
    %838 = vmatprep.subr.bf16.mxu0 0
    %839 = vmatpush1.bf16.msra.mxu0 0
    %840 = vmatprep.subr.bf16.mxu0 0
    %841 = vmatpush1.bf16.msra.mxu0 0
    %842 = vmatprep.subr.bf16.mxu0 0
    %843 = vmatpush1.bf16.msra.mxu0 0
    %844 = vmatprep.subr.bf16.mxu0 0
    %845 = vmatpush1.bf16.msra.mxu0 0
    %846 = vmatprep.mubr.bf16.mxu0 0
    %847 = vmatmul.mubr.bf16.gmra.mrb[0].mxu0 %v812
    %v848 = vpop.f32.mrb[0].mxu0
    %v849 = vadd.f32 0.0, %v848
    %v850 = vpop.f32.mrb[0].mxu0
    %v851 = vadd.f32 0.0, %v850
    %v852 = vpop.f32.mrb[0].mxu0
    %v853 = vpop.f32.mrb[0].mxu0
    %854 = vdwg.mxu0
    %v855 = vadd.f32 %v805, %v849
    %v856 = vadd.f32 %v806, %v851
    %v857 = vtanh.pop %v855
    %v858 = vtanh.pop %v856
    %v859 = vxor.u32 %v855, 2147483648
    %v860 = vxor.u32 %v856, 2147483648
    %v861 = vmul.f32 %v859, 1.442695
    %v862 = vpow.pop %v861
    %v863 = vmul.f32 %v860, 1.442695
    %v864 = vpow.pop %v863
    %v865 = vadd.f32 %v862, 1.0
    %v866 = vadd.f32 %v864, 1.0
    %v867 = vrcp.pop %v865
    %v868 = vmul.f32 1.0, %v867
    %v869 = vrcp.pop %v866
    %v870 = vmul.f32 1.0, %v869
    %v871 = vsel %vm374, %v857, %v868
    %v872 = vsel %vm375, %v858, %v870
    %v873 = vmul.f32 %v871, %v795
    %v874 = vmul.f32 %v871, %v872
    %876 = vrot.lane.b32.xlu0 %v874, 64
    %v877 = vpop.permute.xlu0 %876
    %v879 = vadd.f32 %v873, %v877
    %v880 = vtanh.pop %v879
    %v881 = vmul.f32 %v872, %v880
    %v882 = vsel %vm391, %v608, %v603
    %884 = vrot.lane.b32.xlu0 %v881, 64
    %v885 = vpop.permute.xlu0 %884
    %v887 = vmul.f32 %v882, %v885
    %v888 = vadd.f32 %v804, %v887
    %v889 = vsel %vm259, %v413, %v410
    %v890 = vsel %vm260, %v414, %v411
    %v891 = vpack.c.bf16 %v881, %v881
    %893 = vrot.lane.b32.xlu0 %v891, 64
    %v894 = vpop.permute.xlu0 %893
    %v896 = vsel %vm311, %v894, 0
    %898 = vmatprep.subr.bf16.mxu0 %v296
    %899 = vmatpush1.bf16.msra.mxu0 %v295
    %900 = vmatprep.subr.bf16.mxu0 %v298
    %901 = vmatpush1.bf16.msra.mxu0 %v297
    %902 = vmatprep.subr.bf16.mxu0 %v300
    %903 = vmatpush1.bf16.msra.mxu0 %v299
    %904 = vmatprep.subr.bf16.mxu0 %v302
    %905 = vmatpush1.bf16.msra.mxu0 %v301
    %906 = vmatprep.subr.bf16.mxu0 0
    %907 = vmatpush1.bf16.msra.mxu0 0
    %908 = vmatprep.subr.bf16.mxu0 0
    %909 = vmatpush1.bf16.msra.mxu0 0
    %910 = vmatprep.subr.bf16.mxu0 0
    %911 = vmatpush1.bf16.msra.mxu0 0
    %912 = vmatprep.subr.bf16.mxu0 0
    %913 = vmatpush1.bf16.msra.mxu0 0
    %914 = vmatprep.subr.bf16.mxu0 0
    %915 = vmatpush1.bf16.msra.mxu0 0
    %916 = vmatprep.subr.bf16.mxu0 0
    %917 = vmatpush1.bf16.msra.mxu0 0
    %918 = vmatprep.subr.bf16.mxu0 0
    %919 = vmatpush1.bf16.msra.mxu0 0
    %920 = vmatprep.subr.bf16.mxu0 0
    %921 = vmatpush1.bf16.msra.mxu0 0
    %922 = vmatprep.subr.bf16.mxu0 0
    %923 = vmatpush1.bf16.msra.mxu0 0
    %924 = vmatprep.subr.bf16.mxu0 0
    %925 = vmatpush1.bf16.msra.mxu0 0
    %926 = vmatprep.subr.bf16.mxu0 0
    %927 = vmatpush1.bf16.msra.mxu0 0
    %928 = vmatprep.subr.bf16.mxu0 0
    %929 = vmatpush1.bf16.msra.mxu0 0
    %930 = vmatprep.mubr.bf16.mxu0 0
    %931 = vmatmul.mubr.bf16.gmra.mrb[0].mxu0 %v896
    %v932 = vpop.f32.mrb[0].mxu0
    %v933 = vadd.f32 0.0, %v932
    %v934 = vpop.f32.mrb[0].mxu0
    %v935 = vadd.f32 0.0, %v934
    %v936 = vpop.f32.mrb[0].mxu0
    %v937 = vpop.f32.mrb[0].mxu0
    %938 = vdwg.mxu0
    %v939 = vadd.f32 %v889, %v933
    %v940 = vadd.f32 %v890, %v935
    %v941 = vtanh.pop %v939
    %v942 = vtanh.pop %v940
    %v943 = vxor.u32 %v939, 2147483648
    %v944 = vxor.u32 %v940, 2147483648
    %v945 = vmul.f32 %v943, 1.442695
    %v946 = vpow.pop %v945
    %v947 = vmul.f32 %v944, 1.442695
    %v948 = vpow.pop %v947
    %v949 = vadd.f32 %v946, 1.0
    %v950 = vadd.f32 %v948, 1.0
    %v951 = vrcp.pop %v949
    %v952 = vmul.f32 1.0, %v951
    %v953 = vrcp.pop %v950
    %v954 = vmul.f32 1.0, %v953
    %v955 = vsel %vm374, %v941, %v952
    %v956 = vsel %vm375, %v942, %v954
    %v957 = vmul.f32 %v955, %v879
    %v958 = vmul.f32 %v955, %v956
    %960 = vrot.lane.b32.xlu0 %v958, 64
    %v961 = vpop.permute.xlu0 %960
    %v963 = vadd.f32 %v957, %v961
    %v964 = vtanh.pop %v963
    %v965 = vmul.f32 %v956, %v964
    %v966 = vsel %vm391, %v504, %v499
    %968 = vrot.lane.b32.xlu0 %v965, 64
    %v969 = vpop.permute.xlu0 %968
    %v971 = vmul.f32 %v966, %v969
    %v972 = vadd.f32 %v888, %v971
    %v973 = vsel %vm259, %v255, %v252
    %v974 = vsel %vm260, %v256, %v253
    %v975 = vpack.c.bf16 %v965, %v965
    %977 = vrot.lane.b32.xlu0 %v975, 64
    %v978 = vpop.permute.xlu0 %977
    %v980 = vsel %vm311, %v978, 0
    %982 = vmatprep.subr.bf16.mxu0 %v296
    %983 = vmatpush1.bf16.msra.mxu0 %v295
    %984 = vmatprep.subr.bf16.mxu0 %v298
    %985 = vmatpush1.bf16.msra.mxu0 %v297
    %986 = vmatprep.subr.bf16.mxu0 %v300
    %987 = vmatpush1.bf16.msra.mxu0 %v299
    %988 = vmatprep.subr.bf16.mxu0 %v302
    %989 = vmatpush1.bf16.msra.mxu0 %v301
    %990 = vmatprep.subr.bf16.mxu0 0
    %991 = vmatpush1.bf16.msra.mxu0 0
    %992 = vmatprep.subr.bf16.mxu0 0
    %993 = vmatpush1.bf16.msra.mxu0 0
    %994 = vmatprep.subr.bf16.mxu0 0
    %995 = vmatpush1.bf16.msra.mxu0 0
    %996 = vmatprep.subr.bf16.mxu0 0
    %997 = vmatpush1.bf16.msra.mxu0 0
    %998 = vmatprep.subr.bf16.mxu0 0
    %999 = vmatpush1.bf16.msra.mxu0 0
    %1000 = vmatprep.subr.bf16.mxu0 0
    %1001 = vmatpush1.bf16.msra.mxu0 0
    %1002 = vmatprep.subr.bf16.mxu0 0
    %1003 = vmatpush1.bf16.msra.mxu0 0
    %1004 = vmatprep.subr.bf16.mxu0 0
    %1005 = vmatpush1.bf16.msra.mxu0 0
    %1006 = vmatprep.subr.bf16.mxu0 0
    %1007 = vmatpush1.bf16.msra.mxu0 0
    %1008 = vmatprep.subr.bf16.mxu0 0
    %1009 = vmatpush1.bf16.msra.mxu0 0
    %1010 = vmatprep.subr.bf16.mxu0 0
    %1011 = vmatpush1.bf16.msra.mxu0 0
    %1012 = vmatprep.subr.bf16.mxu0 0
    %1013 = vmatpush1.bf16.msra.mxu0 0
    %1014 = vmatprep.mubr.bf16.mxu0 0
    %1015 = vmatmul.mubr.bf16.gmra.mrb[0].mxu0 %v980
    %v1016 = vpop.f32.mrb[0].mxu0
    %v1017 = vadd.f32 0.0, %v1016
    %v1018 = vpop.f32.mrb[0].mxu0
    %v1019 = vadd.f32 0.0, %v1018
    %v1020 = vpop.f32.mrb[0].mxu0
    %v1021 = vpop.f32.mrb[0].mxu0
    %1022 = vdwg.mxu0
    %v1023 = vadd.f32 %v973, %v1017
    %v1024 = vadd.f32 %v974, %v1019
    %v1025 = vtanh.pop %v1023
    %v1026 = vtanh.pop %v1024
    %v1027 = vxor.u32 %v1023, 2147483648
    %v1028 = vxor.u32 %v1024, 2147483648
    %v1029 = vmul.f32 %v1027, 1.442695
    %v1030 = vpow.pop %v1029
    %v1031 = vmul.f32 %v1028, 1.442695
    %v1032 = vpow.pop %v1031
    %v1033 = vadd.f32 %v1030, 1.0
    %v1034 = vadd.f32 %v1032, 1.0
    %v1035 = vrcp.pop %v1033
    %v1036 = vmul.f32 1.0, %v1035
    %v1037 = vrcp.pop %v1034
    %v1038 = vmul.f32 1.0, %v1037
    %v1039 = vsel %vm374, %v1025, %v1036
    %v1040 = vsel %vm375, %v1026, %v1038
    %v1041 = vmul.f32 %v1039, %v963
    %v1042 = vmul.f32 %v1039, %v1040
    %1044 = vrot.lane.b32.xlu0 %v1042, 64
    %v1045 = vpop.permute.xlu0 %1044
    %v1047 = vadd.f32 %v1041, %v1045
    %v1048 = vtanh.pop %v1047
    %v1049 = vmul.f32 %v1040, %v1048
    %v1050 = vsel %vm391, %v400, %v395
    %1052 = vrot.lane.b32.xlu0 %v1049, 64
    %v1053 = vpop.permute.xlu0 %1052
    %v1055 = vmul.f32 %v1050, %v1053
    %v1056 = vadd.f32 %v972, %v1055
    %v1057 = vld [vmem:[%s1] sm:$0xff]
    %v1058 = vld [vmem:[%s1 + $0x8] sm:$0xff]
    %v1059 = vld [vmem:[%s1 + $0x10] sm:$0xff]
    %v1060 = vld [vmem:[%s1 + $0x18] sm:$0xff]
    %v1061 = vld [vmem:[%s1 + $0x20] sm:$0xff]
    %v1062 = vld [vmem:[%s1 + $0x28] sm:$0xff]
    %v1063 = vld [vmem:[%s1 + $0x30] sm:$0xff]
    %v1064 = vld [vmem:[%s1 + $0x38] sm:$0xff]
    %vm1065 = vcmask 7168
    %v1066 = vsel %vm1065, %v1057, 0.0
    %v1067 = vsel %vm1065, %v1058, 0.0
    %v1068 = vadd.f32 %v1066, %v1067
    %v1069 = vsel %vm1065, %v1059, 0.0
    %v1070 = vadd.f32 %v1068, %v1069
    %v1071 = vsel %vm1065, %v1060, 0.0
    %v1072 = vadd.f32 %v1070, %v1071
    %v1073 = vsel %vm1065, %v1061, 0.0
    %v1074 = vadd.f32 %v1072, %v1073
    %v1075 = vsel %vm1065, %v1062, 0.0
    %v1076 = vadd.f32 %v1074, %v1075
    %v1077 = vsel %vm1065, %v1063, 0.0
    %v1078 = vadd.f32 %v1076, %v1077
    %v1079 = vsel %vm1065, %v1064, 0.0
    %v1080 = vadd.f32 %v1078, %v1079
    %vm1081 = vcmp.gt.f32.partialorder %v1080, 0.0
    %v1082 = vsel %vm1081, %v1080, 1.0
    %1084 = vset.pattern.permute.xlu0 0
    %1085 = vperm.xlu0 %1084, %v1082
    %v1086 = vpop.permute.xlu0 %1085
    %v1088 = vrcp.pop %v1086
    %v1089 = vmul.f32 %v1056, %v1088
    %v1090 = vsel %vm1081, 1, 0
    %1091 = vset.pattern.permute.xlu0 0
    %1092 = vperm.xlu0 %1091, %v1090
    %v1093 = vpop.permute.xlu0 %1092
    %vm1094 = vcmp.eq.s32.totalorder %v1093, 1
    %v1095 = vsel %vm1094, %v1089, 0.0
    %v1096 = vsel %vm311, %v1095, 0.0
    %1097 = vst [vmem:[#allocation8] sm:$0xff] %v1096
    // Predicated region
    $region30: #{tpu_custom_call.1} parent=1 // pred_check
      _
    $region31: #{tpu_custom_call.1} parent=1 // pred_check_branch
      %1099 = sbr.rel (0) target = $region33
    $region32: #{tpu_custom_call.1} parent=1 // pred_region
      %s1101 = ssub.s32 128, 128
      %1102 = vsyncadd [#allocation5], %s1101
      %s1104 = sshll.u32 [#allocation8], 4
      %s1105 = int_to_ptr.vmem [resolvable:$true] %s1104
      %1107 = dma.vmem_to_hbm [thread:$0]  %s1105, 128, %s5, [#allocation5]
    $region33: #{tpu_custom_call.1} parent=1 // pred_fallthru
      _
    // Predicated region
    $region34: #{tpu_custom_call.1} parent=1 // pred_check
      _
    $region35: #{tpu_custom_call.1} parent=1 // pred_check_branch
      %1109 = sbr.rel (0) target = $region37
    $region36: #{tpu_custom_call.1} parent=1 // pred_region
      %1110 = dma.done [#allocation5], 128
    $region37: #{tpu_custom_call.1} parent=1 // pred_fallthru
      _
    %1111 = vsyncpa [#allocation4], 1
    %1112 = vsyncpa [#allocation7], 1
    %1113 = vsyncpa [#allocation5], 1

</llo_original>
